<compile_context>
chip_gen: v7x
topology: tpu7x:2x2x1
jax: 0.10.0
libtpu: 0.0.40
codegen_flags: <defaults>
</compile_context>

<pallas_src>
import functools

import numpy as np
import jax
import jax.numpy as jnp
from jax.experimental import pallas as pl
from jax.experimental.pallas import tpu as pltpu

EPS = float(jnp.finfo(jnp.float32).eps)       # torch.finfo(torch.float32).eps
CLAMP_MIN = 1e-7                              # clamp inside _stft
CLAMP_SQRT = float(np.sqrt(CLAMP_MIN))        # sqrt(clamp(v^2)) == max(|v|, CLAMP_SQRT)


# ----------------------------- parameter / glue setup -----------------------------

def _windowed_dft_weight(n_fft, win_length):
    """Fused window-folded, densely packed onesided DFT weight, shape (n_fft, n_fft) bf16:
      cols [0, h)      : win * cos(2*pi*n*k/N), bins k = 0..h-1   (real parts)
      col  h           : win * cos(pi*n)  -- Nyquist real part (re-uses the dead sin_0 lane)
      cols (h, n_fft)  : win * sin(2*pi*n*k/N), bins k = 1..h-1   (imag parts, sign-free)
    where h = n_fft // 2."""
    h = n_fft // 2
    n = np.arange(n_fft, dtype=np.float64)[:, None]
    k = np.arange(h, dtype=np.float64)[None, :]
    ang = 2.0 * np.pi * ((n * k) % n_fft) / n_fft      # mod keeps argument small
    cosm = np.cos(ang)
    sinm = np.sin(ang)

    # torch.hann_window(win_length) (periodic): 0.5 - 0.5*cos(2*pi*m/N), centered-padded.
    m = np.arange(win_length, dtype=np.float64)
    win = 0.5 - 0.5 * np.cos(2.0 * np.pi * m / win_length)
    winp = np.zeros(n_fft, dtype=np.float64)
    lpad = (n_fft - win_length) // 2
    winp[lpad:lpad + win_length] = win

    W = np.zeros((n_fft, n_fft), dtype=np.float32)
    W[:, :h] = winp[:, None] * cosm
    W[:, h:] = winp[:, None] * sinm                    # column h is sin_0 == 0
    W[:, h] = winp * np.cos(np.pi * n[:, 0])           # Nyquist real part in the dead lane
    return jnp.asarray(W, dtype=jnp.bfloat16)


def _padded_window_f32(n_fft, win_length):
    n = jnp.arange(win_length, dtype=jnp.float32)
    win = 0.5 - 0.5 * jnp.cos(2.0 * jnp.pi * n / win_length)
    lpad = (n_fft - win_length) // 2
    return jnp.pad(win, (lpad, n_fft - win_length - lpad))


def _frame_signal(x2, n_fft, hop_length, dtype):
    """torch.stft(center=True, pad_mode='reflect') framing of (S, T) -> (S, n_frames, n_fft).
    Uses static shifted slices (no gather) when n_fft % hop == 0."""
    pad = n_fft // 2
    xp = jnp.pad(x2, ((0, 0), (pad, pad)), mode="reflect").astype(dtype)
    t_padded = xp.shape[1]
    n_frames = 1 + (t_padded - n_fft) // hop_length
    if n_fft % hop_length == 0:
        r = n_fft // hop_length
        nb = n_frames + r - 1                           # nb*hop <= t_padded always
        blocks = xp[:, :nb * hop_length].reshape(xp.shape[0], nb, hop_length)
        frames = jnp.concatenate([blocks[:, b:b + n_frames, :] for b in range(r)], axis=-1)
    else:
        # TODO(synk): general hop sizes fall back to a gather; not hit by the default config.
        idx = jnp.arange(n_frames)[:, None] * hop_length + jnp.arange(n_fft)[None, :]
        frames = xp[:, idx]
    return frames, n_frames


# ----------------------------------- kernel ---------------------------------------

def _stft_loss_kernel(xyf_ref, w_ref, out_ref, acc_d, acc_y, acc_l,
                      *, tm, h, total_rows):
    p = pl.program_id(0)
    i = pl.program_id(1)
    n_i = pl.num_programs(1)

    @pl.when(i == 0)
    def _init():
        acc_d[...] = jnp.zeros_like(acc_d)
        acc_y[...] = jnp.zeros_like(acc_y)
        acc_l[...] = jnp.zeros_like(acc_l)

    # One fused MXU dot for both signals: (2*tm, n_fft) @ (n_fft, 2*h) -> (2*tm, 2*h) f32.
    w = w_ref[...]                                         # (n_fft, 2h) bf16
    xy = xyf_ref[...].reshape(2 * tm, w.shape[0])          # leading-dim collapse: layout no-op
    s = jnp.dot(xy, w, preferred_element_type=jnp.float32)
    xs, ys = s[:tm], s[tm:]                                # sublane split at tm (mult of 8)

    lane0 = jax.lax.broadcasted_iota(jnp.int32, (1, h), 1) == 0

    xr, xb = xs[:, :h], xs[:, h:]
    yr, yb = ys[:, :h], ys[:, h:]
    xi = jnp.where(lane0, 0.0, xb)       # bin-0 imag is 0; lane 0 of the sin half is Nyquist
    yi = jnp.where(lane0, 0.0, yb)

    x2 = jnp.maximum(xr * xr + xi * xi, CLAMP_MIN)         # clamped |X|^2, bins 0..h-1
    y2 = jnp.maximum(yr * yr + yi * yi, CLAMP_MIN)
    x_mag = jnp.sqrt(x2)
    y_mag = jnp.sqrt(y2)
    d = y_mag - x_mag
    la = jnp.abs(jnp.log(EPS + y_mag) - jnp.log(EPS + x_mag))

    # Nyquist bin (real-only) stub: magnitude = max(|v|, sqrt(clamp_min)) -> no sqrt needed.
    xn = xs[:, h:h + 1]                                    # (tm, 1)
    yn = ys[:, h:h + 1]
    xn_mag = jnp.maximum(jnp.abs(xn), CLAMP_SQRT)
    yn_mag = jnp.maximum(jnp.abs(yn), CLAMP_SQRT)
    dn = yn_mag - xn_mag
    lan = jnp.abs(jnp.log(EPS + yn_mag) - jnp.log(EPS + xn_mag))
    yn2 = jnp.maximum(yn * yn, CLAMP_MIN)

    # Zero-padded rows: frames are exactly 0 for both signals -> x_mag == y_mag everywhere,
    # so d, la, dn, lan are exactly 0; only the |Y|^2 sum needs the row mask.
    row = (p * n_i + i) * tm + jax.lax.broadcasted_iota(jnp.int32, (tm, 1), 0)
    valid = row < total_rows

    acc_d[...] += d * d + jnp.where(lane0, dn * dn, 0.0)
    acc_l[...] += la + jnp.where(lane0, lan, 0.0)
    acc_y[...] += jnp.where(valid, y2 + jnp.where(lane0, yn2, 0.0), 0.0)

    @pl.when(i == n_i - 1)
    def _finalize():
        s0 = jnp.sum(acc_d[...])          # sum (|Y| - |X|)^2
        s1 = jnp.sum(acc_y[...])          # sum |Y|^2
        s2 = jnp.sum(acc_l[...])          # sum |log(eps+|Y|) - log(eps+|X|)|
        sub = jax.lax.broadcasted_iota(jnp.int32, (1, 8, 128), 1)
        out_ref[...] = jnp.where(sub == 0, s0,
                        jnp.where(sub == 1, s1,
                         jnp.where(sub == 2, s2, 0.0)))


# ----------------------------------- wrapper ---------------------------------------

def stft_losses(x, y, *, n_fft=256, hop_length=64, win_length=160,
                tm=512, num_partials=2, core_parallel=False):
    """Equivalent of STFTLosses(n_fft, hop_length, win_length, 'hann_window',
    normalized=False).forward(x, y) with x, y of shape (B, C, T).
    Returns (sc_loss, mag_loss) float32 scalars."""
    B, C, T = x.shape
    assert n_fft % 256 == 0, "dense frequency packing requires n_fft % 256 == 0"
    h = n_fft // 2
    n_freq = h + 1

    # Stack x/y first so the bf16 framed slab is materialized once for both signals.
    sig = jnp.stack([x.reshape(B * C, T), y.reshape(B * C, T)], axis=0)
    sig = sig.astype(jnp.float32).reshape(2 * B * C, T)
    frames, n_frames = _frame_signal(sig, n_fft, hop_length, jnp.bfloat16)
    rows = B * C * n_frames
    xyf = frames.reshape(2, rows, n_fft)               # [0]=x frames, [1]=y frames

    # Row-tile size: default 512, shrunk (to a multiple of 128) for tiny inputs.
    unit = 128
    per_part = -(-rows // num_partials)
    tm_eff = max(unit, min(tm, ((per_part + unit - 1) // unit) * unit))
    step_rows = num_partials * tm_eff
    rows_pad = ((rows + step_rows - 1) // step_rows) * step_rows
    if rows_pad != rows:
        xyf = jnp.pad(xyf, ((0, 0), (0, rows_pad - rows), (0, 0)))
    n_i = rows_pad // step_rows                        # row tiles per partition

    W = _windowed_dft_weight(n_fft, win_length)

    kernel = functools.partial(_stft_loss_kernel, tm=tm_eff, h=h, total_rows=rows)
    # core_parallel=True: explicit cross-TensorCore sharding of the leading axis on v7x.
    dims = ((pltpu.CORE_PARALLEL, pltpu.ARBITRARY) if core_parallel
            else ("parallel", "arbitrary"))

    out = pl.pallas_call(
        kernel,
        out_shape=jax.ShapeDtypeStruct((num_partials, 8, 128), jnp.float32),
        grid=(num_partials, n_i),
        in_specs=[
            pl.BlockSpec((2, tm_eff, n_fft), lambda p, i: (0, p * n_i + i, 0)),  # x+y frames
            pl.BlockSpec((n_fft, n_fft), lambda p, i: (0, 0)),                   # fused weight
        ],
        out_specs=pl.BlockSpec((1, 8, 128), lambda p, i: (p, 0, 0)),             # partials
        scratch_shapes=[pltpu.VMEM((tm_eff, h), jnp.float32)] * 3,
        compiler_params=pltpu.CompilerParams(dimension_semantics=dims),
    )(xyf, W)

    partials = out[:, :3, 0]                 # (num_partials, 3)
    s = jnp.sum(partials, axis=0)
    sc_loss = jnp.sqrt(s[0]) / (jnp.sqrt(s[1]) + EPS)
    mag_loss = s[2] / (rows * n_freq)
    return sc_loss, mag_loss


# ----------------------------- pure-JAX reference ----------------------------------

def stft_losses_ref(x, y, *, n_fft=256, hop_length=64, win_length=160):
    B, C, T = x.shape
    win = _padded_window_f32(n_fft, win_length)

    def mag(sig):
        frames, _ = _frame_signal(sig.reshape(B * C, T).astype(jnp.float32),
                                  n_fft, hop_length, jnp.float32)
        sp = jnp.fft.rfft(frames * win, n=n_fft, axis=-1)
        return jnp.sqrt(jnp.maximum(jnp.real(sp) ** 2 + jnp.imag(sp) ** 2, CLAMP_MIN))

    xm, ym = mag(x), mag(y)
    sc = jnp.linalg.norm((ym - xm).ravel()) / (jnp.linalg.norm(ym.ravel()) + EPS)
    mg = jnp.mean(jnp.abs(jnp.log(EPS + ym) - jnp.log(EPS + xm)))
    return sc, mg


if __name__ == "__main__":
    key = jax.random.PRNGKey(0)
    kx, ky = jax.random.split(key)
    B, C, T = 2, 2, 1024                      # small shapes; STFT config n_fft=256, hop=64, win=160
    x = jax.random.normal(kx, (B, C, T), dtype=jnp.float32)
    y = x + 0.1 * jax.random.normal(ky, (B, C, T), dtype=jnp.float32)

    sc, mg = stft_losses(x, y)
    (sc, mg) = jax.block_until_ready((sc, mg))

    sc_r, mg_r = stft_losses_ref(x, y)
    # Tolerance reflects bf16 frames + single-pass bf16 MXU (f32 reference uses exact rfft).
    assert jnp.allclose(sc, sc_r, rtol=1e-2, atol=1e-3), (float(sc), float(sc_r))
    assert jnp.allclose(mg, mg_r, rtol=1e-2, atol=1e-3), (float(mg), float(mg_r))

    print("KERNEL_OK")
</pallas_src>

<mosaic_0001>
module attributes {stable_mosaic.version = 11 : i64} {
  func.func @_stft_loss_kernel(%arg0: i32, %arg1: i32, %arg2: memref<2x128x256xbf16, #tpu.memory_space<vmem>>, %arg3: memref<256x256xbf16, #tpu.memory_space<vmem>>, %arg4: memref<1x8x128xf32, #tpu.memory_space<vmem>>, %arg5: memref<128x128xf32, #tpu.memory_space<vmem>>, %arg6: memref<128x128xf32, #tpu.memory_space<vmem>>, %arg7: memref<128x128xf32, #tpu.memory_space<vmem>>) attributes {dimension_semantics = [#tpu.dimension_semantics<parallel>, #tpu.dimension_semantics<arbitrary>], iteration_bounds = array<i64: 2, 1>, scalar_prefetch = 0 : i64, scratch_operands = 3 : i64, tpu.core_type = #tpu.core_type<tc>, window_params = [{transform_indices = @transform_0, window_bounds = array<i64: 2, 128, 256>}, {pipeline_mode = #tpu.pipeline_mode<synchronous>, transform_indices = @transform_1, window_bounds = array<i64: 256, 256>}, {transform_indices = @transform_2, window_bounds = array<i64: 1, 8, 128>}]} {
    %c0_i32 = arith.constant 0 : i32
    %0 = arith.cmpi eq, %arg1, %c0_i32 : i32
    %1 = arith.extui %0 : i1 to i32
    %c0_i32_0 = arith.constant 0 : i32
    %2 = arith.cmpi ne, %1, %c0_i32_0 : i32
    scf.if %2 {
      %cst_35 = arith.constant 0.000000e+00 : f32
      %112 = vector.broadcast %cst_35 : f32 to vector<128x128xf32>
      %c0_36 = arith.constant 0 : index
      %c0_37 = arith.constant 0 : index
      %113 = vector.load %arg5[%c0_36, %c0_37] : memref<128x128xf32, #tpu.memory_space<vmem>>, vector<128x128xf32>
      tpu.vector_store %arg5[%c0_36, %c0_37], %112 {strides = array<i32>} : memref<128x128xf32, #tpu.memory_space<vmem>>, vector<128x128xf32>,
      %cst_38 = arith.constant 0.000000e+00 : f32
      %114 = vector.broadcast %cst_38 : f32 to vector<128x128xf32>
      %c0_39 = arith.constant 0 : index
      %c0_40 = arith.constant 0 : index
      %115 = vector.load %arg6[%c0_39, %c0_40] : memref<128x128xf32, #tpu.memory_space<vmem>>, vector<128x128xf32>
      tpu.vector_store %arg6[%c0_39, %c0_40], %114 {strides = array<i32>} : memref<128x128xf32, #tpu.memory_space<vmem>>, vector<128x128xf32>,
      %cst_41 = arith.constant 0.000000e+00 : f32
      %116 = vector.broadcast %cst_41 : f32 to vector<128x128xf32>
      %c0_42 = arith.constant 0 : index
      %c0_43 = arith.constant 0 : index
      %117 = vector.load %arg7[%c0_42, %c0_43] : memref<128x128xf32, #tpu.memory_space<vmem>>, vector<128x128xf32>
      tpu.vector_store %arg7[%c0_42, %c0_43], %116 {strides = array<i32>} : memref<128x128xf32, #tpu.memory_space<vmem>>, vector<128x128xf32>,
    } else {
    }
    %c0 = arith.constant 0 : index
    %c0_1 = arith.constant 0 : index
    %3 = vector.load %arg3[%c0, %c0_1] : memref<256x256xbf16, #tpu.memory_space<vmem>>, vector<256x256xbf16>
    %c0_2 = arith.constant 0 : index
    %c0_3 = arith.constant 0 : index
    %c0_4 = arith.constant 0 : index
    %4 = vector.load %arg2[%c0_2, %c0_3, %c0_4] : memref<2x128x256xbf16, #tpu.memory_space<vmem>>, vector<2x128x256xbf16>
    %5 = vector.shape_cast %4 : vector<2x128x256xbf16> to vector<256x256xbf16>
    %cst = arith.constant dense<0.000000e+00> : vector<256x256xf32>
    %6 = tpu.matmul %5, %3, %cst {dimension_numbers = #tpu.dot_dimension_numbers<[1], [0], [0], [1], [0, 0, 1, 1], [], []>} : vector<256x256xbf16>, vector<256x256xbf16>, vector<256x256xf32> -> vector<256x256xf32>
    %7 = vector.extract_strided_slice %6 {offsets = [0, 0], sizes = [128, 256], strides = [1, 1]} : vector<256x256xf32> to vector<128x256xf32>
    %8 = vector.extract_strided_slice %6 {offsets = [128, 0], sizes = [128, 256], strides = [1, 1]} : vector<256x256xf32> to vector<128x256xf32>
    %9 = tpu.iota {dimensions = array<i32: 1>} : vector<1x128xi32>
    %c0_i32_5 = arith.constant 0 : i32
    %10 = vector.broadcast %c0_i32_5 : i32 to vector<1x128xi32>
    %11 = arith.cmpi eq, %9, %10 : vector<1x128xi32>
    %12 = vector.extract_strided_slice %7 {offsets = [0, 0], sizes = [128, 128], strides = [1, 1]} : vector<128x256xf32> to vector<128x128xf32>
    %13 = vector.extract_strided_slice %7 {offsets = [0, 128], sizes = [128, 128], strides = [1, 1]} : vector<128x256xf32> to vector<128x128xf32>
    %14 = vector.extract_strided_slice %8 {offsets = [0, 0], sizes = [128, 128], strides = [1, 1]} : vector<128x256xf32> to vector<128x128xf32>
    %15 = vector.extract_strided_slice %8 {offsets = [0, 128], sizes = [128, 128], strides = [1, 1]} : vector<128x256xf32> to vector<128x128xf32>
    %cst_6 = arith.constant 0.000000e+00 : f32
    %16 = vector.shape_cast %11 : vector<1x128xi1> to vector<1x128xi1>
    %17 = vector.broadcast %16 : vector<1x128xi1> to vector<128x128xi1>
    %18 = vector.broadcast %cst_6 : f32 to vector<128x128xf32>
    %19 = arith.select %17, %18, %13 : vector<128x128xi1>, vector<128x128xf32>
    %cst_7 = arith.constant 0.000000e+00 : f32
    %20 = vector.shape_cast %11 : vector<1x128xi1> to vector<1x128xi1>
    %21 = vector.broadcast %20 : vector<1x128xi1> to vector<128x128xi1>
    %22 = vector.broadcast %cst_7 : f32 to vector<128x128xf32>
    %23 = arith.select %21, %22, %15 : vector<128x128xi1>, vector<128x128xf32>
    %24 = arith.mulf %12, %12 : vector<128x128xf32>
    %25 = arith.mulf %19, %19 : vector<128x128xf32>
    %26 = arith.addf %24, %25 : vector<128x128xf32>
    %cst_8 = arith.constant 1.000000e-07 : f32
    %27 = vector.broadcast %cst_8 : f32 to vector<128x128xf32>
    %28 = arith.maximumf %26, %27 : vector<128x128xf32>
    %29 = arith.mulf %14, %14 : vector<128x128xf32>
    %30 = arith.mulf %23, %23 : vector<128x128xf32>
    %31 = arith.addf %29, %30 : vector<128x128xf32>
    %cst_9 = arith.constant 1.000000e-07 : f32
    %32 = vector.broadcast %cst_9 : f32 to vector<128x128xf32>
    %33 = arith.maximumf %31, %32 : vector<128x128xf32>
    %34 = math.sqrt %28 : vector<128x128xf32>
    %35 = math.sqrt %33 : vector<128x128xf32>
    %36 = arith.subf %35, %34 : vector<128x128xf32>
    %cst_10 = arith.constant 1.1920929E-7 : f32
    %37 = vector.broadcast %cst_10 : f32 to vector<128x128xf32>
    %38 = arith.addf %37, %35 : vector<128x128xf32>
    %39 = math.log %38 : vector<128x128xf32>
    %cst_11 = arith.constant 1.1920929E-7 : f32
    %40 = vector.broadcast %cst_11 : f32 to vector<128x128xf32>
    %41 = arith.addf %40, %34 : vector<128x128xf32>
    %42 = math.log %41 : vector<128x128xf32>
    %43 = arith.subf %39, %42 : vector<128x128xf32>
    %44 = math.absf %43 : vector<128x128xf32>
    %45 = vector.extract_strided_slice %7 {offsets = [0, 128], sizes = [128, 1], strides = [1, 1]} : vector<128x256xf32> to vector<128x1xf32>
    %46 = vector.extract_strided_slice %8 {offsets = [0, 128], sizes = [128, 1], strides = [1, 1]} : vector<128x256xf32> to vector<128x1xf32>
    %47 = math.absf %45 : vector<128x1xf32>
    %cst_12 = arith.constant 3.16227757E-4 : f32
    %48 = vector.broadcast %cst_12 : f32 to vector<128x1xf32>
    %49 = arith.maximumf %47, %48 : vector<128x1xf32>
    %50 = math.absf %46 : vector<128x1xf32>
    %cst_13 = arith.constant 3.16227757E-4 : f32
    %51 = vector.broadcast %cst_13 : f32 to vector<128x1xf32>
    %52 = arith.maximumf %50, %51 : vector<128x1xf32>
    %53 = arith.subf %52, %49 : vector<128x1xf32>
    %cst_14 = arith.constant 1.1920929E-7 : f32
    %54 = vector.broadcast %cst_14 : f32 to vector<128x1xf32>
    %55 = arith.addf %54, %52 : vector<128x1xf32>
    %56 = math.log %55 : vector<128x1xf32>
    %cst_15 = arith.constant 1.1920929E-7 : f32
    %57 = vector.broadcast %cst_15 : f32 to vector<128x1xf32>
    %58 = arith.addf %57, %49 : vector<128x1xf32>
    %59 = math.log %58 : vector<128x1xf32>
    %60 = arith.subf %56, %59 : vector<128x1xf32>
    %61 = math.absf %60 : vector<128x1xf32>
    %62 = arith.mulf %46, %46 : vector<128x1xf32>
    %cst_16 = arith.constant 1.000000e-07 : f32
    %63 = vector.broadcast %cst_16 : f32 to vector<128x1xf32>
    %64 = arith.maximumf %62, %63 : vector<128x1xf32>
    %c1_i32 = arith.constant 1 : i32
    %65 = arith.muli %arg0, %c1_i32 : i32
    %66 = arith.addi %65, %arg1 : i32
    %c128_i32 = arith.constant 128 : i32
    %67 = arith.muli %66, %c128_i32 : i32
    %68 = tpu.iota {dimensions = array<i32: 0>} : vector<128x1xi32>
    %69 = vector.broadcast %67 : i32 to vector<128x1xi32>
    %70 = arith.addi %69, %68 : vector<128x1xi32>
    %c68_i32 = arith.constant 68 : i32
    %71 = vector.broadcast %c68_i32 : i32 to vector<128x1xi32>
    %72 = arith.cmpi slt, %70, %71 : vector<128x1xi32>
    %c0_17 = arith.constant 0 : index
    %c0_18 = arith.constant 0 : index
    %73 = vector.load %arg5[%c0_17, %c0_18] : memref<128x128xf32, #tpu.memory_space<vmem>>, vector<128x128xf32>
    %74 = arith.mulf %36, %36 : vector<128x128xf32>
    %75 = arith.mulf %53, %53 : vector<128x1xf32>
    %cst_19 = arith.constant 0.000000e+00 : f32
    %76 = vector.shape_cast %11 : vector<1x128xi1> to vector<1x128xi1>
    %77 = vector.broadcast %76 : vector<1x128xi1> to vector<128x128xi1>
    %78 = vector.shape_cast %75 : vector<128x1xf32> to vector<128x1xf32>
    %79 = vector.broadcast %78 : vector<128x1xf32> to vector<128x128xf32>
    %80 = vector.broadcast %cst_19 : f32 to vector<128x128xf32>
    %81 = arith.select %77, %79, %80 : vector<128x128xi1>, vector<128x128xf32>
    %82 = arith.addf %74, %81 : vector<128x128xf32>
    %83 = arith.addf %73, %82 : vector<128x128xf32>
    %c0_20 = arith.constant 0 : index
    %c0_21 = arith.constant 0 : index
    %84 = vector.load %arg5[%c0_20, %c0_21] : memref<128x128xf32, #tpu.memory_space<vmem>>, vector<128x128xf32>
    tpu.vector_store %arg5[%c0_20, %c0_21], %83 {strides = array<i32>} : memref<128x128xf32, #tpu.memory_space<vmem>>, vector<128x128xf32>,
    %c0_22 = arith.constant 0 : index
    %c0_23 = arith.constant 0 : index
    %85 = vector.load %arg7[%c0_22, %c0_23] : memref<128x128xf32, #tpu.memory_space<vmem>>, vector<128x128xf32>
    %cst_24 = arith.constant 0.000000e+00 : f32
    %86 = vector.shape_cast %11 : vector<1x128xi1> to vector<1x128xi1>
    %87 = vector.broadcast %86 : vector<1x128xi1> to vector<128x128xi1>
    %88 = vector.shape_cast %61 : vector<128x1xf32> to vector<128x1xf32>
    %89 = vector.broadcast %88 : vector<128x1xf32> to vector<128x128xf32>
    %90 = vector.broadcast %cst_24 : f32 to vector<128x128xf32>
    %91 = arith.select %87, %89, %90 : vector<128x128xi1>, vector<128x128xf32>
    %92 = arith.addf %44, %91 : vector<128x128xf32>
    %93 = arith.addf %85, %92 : vector<128x128xf32>
    %c0_25 = arith.constant 0 : index
    %c0_26 = arith.constant 0 : index
    %94 = vector.load %arg7[%c0_25, %c0_26] : memref<128x128xf32, #tpu.memory_space<vmem>>, vector<128x128xf32>
    tpu.vector_store %arg7[%c0_25, %c0_26], %93 {strides = array<i32>} : memref<128x128xf32, #tpu.memory_space<vmem>>, vector<128x128xf32>,
    %c0_27 = arith.constant 0 : index
    %c0_28 = arith.constant 0 : index
    %95 = vector.load %arg6[%c0_27, %c0_28] : memref<128x128xf32, #tpu.memory_space<vmem>>, vector<128x128xf32>
    %cst_29 = arith.constant 0.000000e+00 : f32
    %96 = vector.shape_cast %11 : vector<1x128xi1> to vector<1x128xi1>
    %97 = vector.broadcast %96 : vector<1x128xi1> to vector<128x128xi1>
    %98 = vector.shape_cast %64 : vector<128x1xf32> to vector<128x1xf32>
    %99 = vector.broadcast %98 : vector<128x1xf32> to vector<128x128xf32>
    %100 = vector.broadcast %cst_29 : f32 to vector<128x128xf32>
    %101 = arith.select %97, %99, %100 : vector<128x128xi1>, vector<128x128xf32>
    %102 = arith.addf %33, %101 : vector<128x128xf32>
    %cst_30 = arith.constant 0.000000e+00 : f32
    %103 = vector.shape_cast %72 : vector<128x1xi1> to vector<128x1xi1>
    %104 = vector.broadcast %103 : vector<128x1xi1> to vector<128x128xi1>
    %105 = vector.broadcast %cst_30 : f32 to vector<128x128xf32>
    %106 = arith.select %104, %102, %105 : vector<128x128xi1>, vector<128x128xf32>
    %107 = arith.addf %95, %106 : vector<128x128xf32>
    %c0_31 = arith.constant 0 : index
    %c0_32 = arith.constant 0 : index
    %108 = vector.load %arg6[%c0_31, %c0_32] : memref<128x128xf32, #tpu.memory_space<vmem>>, vector<128x128xf32>
    tpu.vector_store %arg6[%c0_31, %c0_32], %107 {strides = array<i32>} : memref<128x128xf32, #tpu.memory_space<vmem>>, vector<128x128xf32>,
    %c0_i32_33 = arith.constant 0 : i32
    %109 = arith.cmpi eq, %arg1, %c0_i32_33 : i32
    %110 = arith.extui %109 : i1 to i32
    %c0_i32_34 = arith.constant 0 : i32
    %111 = arith.cmpi ne, %110, %c0_i32_34 : i32
    scf.if %111 {
      %c0_35 = arith.constant 0 : index
      %c0_36 = arith.constant 0 : index
      %112 = vector.load %arg5[%c0_35, %c0_36] : memref<128x128xf32, #tpu.memory_space<vmem>>, vector<128x128xf32>
      %113 = vector.shape_cast %112 : vector<128x128xf32> to vector<1x128x128xf32>
      %cst_37 = arith.constant dense<0.000000e+00> : vector<1xf32>
      %114 = vector.multi_reduction <add>, %113, %cst_37 [1, 2] : vector<1x128x128xf32> to vector<1xf32>
      %115 = vector.shape_cast %114 : vector<1xf32> to vector<1x1x1xf32>
      %116 = vector.extract %115[0, 0, 0] : f32 from vector<1x1x1xf32>
      %c0_38 = arith.constant 0 : index
      %c0_39 = arith.constant 0 : index
      %117 = vector.load %arg6[%c0_38, %c0_39] : memref<128x128xf32, #tpu.memory_space<vmem>>, vector<128x128xf32>
      %118 = vector.shape_cast %117 : vector<128x128xf32> to vector<1x128x128xf32>
      %cst_40 = arith.constant dense<0.000000e+00> : vector<1xf32>
      %119 = vector.multi_reduction <add>, %118, %cst_40 [1, 2] : vector<1x128x128xf32> to vector<1xf32>
      %120 = vector.shape_cast %119 : vector<1xf32> to vector<1x1x1xf32>
      %121 = vector.extract %120[0, 0, 0] : f32 from vector<1x1x1xf32>
      %c0_41 = arith.constant 0 : index
      %c0_42 = arith.constant 0 : index
      %122 = vector.load %arg7[%c0_41, %c0_42] : memref<128x128xf32, #tpu.memory_space<vmem>>, vector<128x128xf32>
      %123 = vector.shape_cast %122 : vector<128x128xf32> to vector<1x128x128xf32>
      %cst_43 = arith.constant dense<0.000000e+00> : vector<1xf32>
      %124 = vector.multi_reduction <add>, %123, %cst_43 [1, 2] : vector<1x128x128xf32> to vector<1xf32>
      %125 = vector.shape_cast %124 : vector<1xf32> to vector<1x1x1xf32>
      %126 = vector.extract %125[0, 0, 0] : f32 from vector<1x1x1xf32>
      %127 = tpu.iota {dimensions = array<i32: 1>} : vector<1x8x128xi32>
      %c0_i32_44 = arith.constant 0 : i32
      %128 = vector.broadcast %c0_i32_44 : i32 to vector<1x8x128xi32>
      %129 = arith.cmpi eq, %127, %128 : vector<1x8x128xi32>
      %c1_i32_45 = arith.constant 1 : i32
      %130 = vector.broadcast %c1_i32_45 : i32 to vector<1x8x128xi32>
      %131 = arith.cmpi eq, %127, %130 : vector<1x8x128xi32>
      %c2_i32 = arith.constant 2 : i32
      %132 = vector.broadcast %c2_i32 : i32 to vector<1x8x128xi32>
      %133 = arith.cmpi eq, %127, %132 : vector<1x8x128xi32>
      %cst_46 = arith.constant 0.000000e+00 : f32
      %134 = vector.broadcast %126 : f32 to vector<1x8x128xf32>
      %135 = vector.broadcast %cst_46 : f32 to vector<1x8x128xf32>
      %136 = arith.select %133, %134, %135 : vector<1x8x128xi1>, vector<1x8x128xf32>
      %137 = vector.broadcast %121 : f32 to vector<1x8x128xf32>
      %138 = arith.select %131, %137, %136 : vector<1x8x128xi1>, vector<1x8x128xf32>
      %139 = vector.broadcast %116 : f32 to vector<1x8x128xf32>
      %140 = arith.select %129, %139, %138 : vector<1x8x128xi1>, vector<1x8x128xf32>
      %c0_47 = arith.constant 0 : index
      %c0_48 = arith.constant 0 : index
      %c0_49 = arith.constant 0 : index
      %141 = vector.load %arg4[%c0_47, %c0_48, %c0_49] : memref<1x8x128xf32, #tpu.memory_space<vmem>>, vector<1x8x128xf32>
      tpu.vector_store %arg4[%c0_47, %c0_48, %c0_49], %140 {strides = array<i32>} : memref<1x8x128xf32, #tpu.memory_space<vmem>>, vector<1x8x128xf32>,
    } else {
    }
    return
  }
  func.func @transform_0(%arg0: i32, %arg1: i32) -> (i32, i32, i32) {
    %c1_i32 = arith.constant 1 : i32
    %0 = arith.muli %arg0, %c1_i32 : i32
    %1 = arith.addi %0, %arg1 : i32
    %c0_i32 = arith.constant 0 : i32
    %c0_i32_0 = arith.constant 0 : i32
    %c0_i32_1 = arith.constant 0 : i32
    return %c0_i32, %1, %c0_i32_0 : i32, i32, i32
  }
  func.func @transform_1(%arg0: i32, %arg1: i32) -> (i32, i32) {
    %c0_i32 = arith.constant 0 : i32
    %c0_i32_0 = arith.constant 0 : i32
    %c0_i32_1 = arith.constant 0 : i32
    return %c0_i32, %c0_i32_0 : i32, i32
  }
  func.func @transform_2(%arg0: i32, %arg1: i32) -> (i32, i32, i32) {
    %c0_i32 = arith.constant 0 : i32
    %c0_i32_0 = arith.constant 0 : i32
    %c0_i32_1 = arith.constant 0 : i32
    return %arg0, %c0_i32, %c0_i32_0 : i32, i32, i32
  }
}

</mosaic_0001>

<llo_original>
// kernel: tpu_custom_call.1
$region0: #{tpu_custom_call.1}
  #allocation0 [shape = 'u32[]', space=smem, size = 0x4, offset = 0x4, fixed_abs, tag = 'smem constant byte address 0x4 - core index']
  #allocation1 [shape = 'u32[144,128]{1,0:T(1,128)}', space=vmem, size = 0x12000, scoped, tag = 'internal scratch']
  #allocation2 [shape = 'f32[128,128]{1,0:T(8,128)}', space=vmem, size = 0x10000, scoped, tag = 'scratch operand']
  #allocation3 [shape = 'f32[128,128]{1,0:T(8,128)}', space=vmem, size = 0x10000, scoped, tag = 'scratch operand']
  #allocation4 [shape = 'f32[128,128]{1,0:T(8,128)}', space=vmem, size = 0x10000, scoped, tag = 'scratch operand']
  #allocation11 [shape = 's32[]', space=sflag, size = 0x4, offset = 0, fixed_abs, tag = 'sflag constant byte address 0x0 - dummy sync flag']
  %s0 = inlined_call_operand.hbm [shape: bf16[2,256,256], index: 0, kind: input, shape index: {}]
  %s1 = inlined_call_operand.hbm [shape: bf16[256,256], index: 1, kind: input, shape index: {}]
  %s2 = inlined_call_operand.hbm [shape: f32[2,8,128], index: 2, kind: output, shape index: {}]
  %s3 = sld [smem:[#allocation0]]
  $region57: #{tpu_custom_call.1} parent=0
    _
  %s5 = ssub.s32 1, %s3
  %s6 = scalar_select 0, %s5, %s3
  $region1: #{tpu_custom_call.1} parent=0
    #allocation5 [shape = 'u8[262144]{0}', space=vmem, size = 0x40000, scoped, tag = 'input window, operand 0']
    #allocation6 [shape = 's32[2]{0}', space=sflag, size = 0x8, scoped, tag = 'scoped memory for tpu_custom_call.1']
    #allocation7 [shape = 's32[2]{0}', space=sflag, size = 0x8, scoped, tag = 'scoped memory for tpu_custom_call.1']
    #allocation8 [shape = 'u8[131072]{0}', space=vmem, size = 0x20000, scoped, tag = 'input window, operand 1, single buffered']
    #allocation9 [shape = 's32[1]{0}', space=sflag, size = 0x4, scoped, tag = 'scoped memory for tpu_custom_call.1']
    #allocation10 [shape = 'u8[8192]{0}', space=vmem, size = 0x2000, scoped, tag = 'output window, operand 0']
    %7 = vsyncpa [#allocation6], 0
    %s8 = scalar_lea.sflag [#allocation6], 1
    %9 = vsyncpa %s8, 0
    %10 = vsyncpa [#allocation9], 0
    %11 = vsyncpa [#allocation7], 0
    %s12 = scalar_lea.sflag [#allocation7], 1
    %13 = vsyncpa %s12, 0
    loop: start=0, step=1, limit=4
    $region2: #{tpu_custom_call.1} parent=1 // loop_pre_header
      _
    $region3: #{tpu_custom_call.1} parent=1 // loop_header
      %s15 = sphi 0, %s19
      %p16 = scmp.ge.s32.totalorder %s15, 4
      %s22 = sphi 0, %s34
      %s23 = sphi 0, %s30
      %s24 = sphi 0, %s22
      %s25 = sphi 0, %s23
      %s26 = sphi 0, %s24
      %s27 = sphi 0, %s25
      %s39 = sphi 0, %s41
      %s42 = sphi 0, %s39
      %s43 = sphi 0, %s42
      %s59 = sphi 0, %s43
      %s63 = sphi 0, %s63
      %s65 = sphi 0, %s63
      %s66 = sphi 0, %s65
      %s80 = sphi 0, %s66
      %s86 = sphi 0, %s88
      %s89 = sphi 0, %s86
      %s90 = sphi 0, %s89
      %s106 = sphi 0, %s90
    $region4: #{tpu_custom_call.1} parent=1 // loop_header_branch
      %18 = sbr.rel (%p16) target = $region8
    $region5: #{tpu_custom_call.1} parent=1 // loop_body
      %s20 = ssub.s32 %s15, 1
      %s21 = ssub.s32 %s15, 2
      %s28 = sadd.s32 1, %s23
      %p29 = scmp.ge.s32.totalorder %s28, 1
      %s30 = scalar_select %p29, 0, %s28
      %s31 = sadd.s32 1, %s22
      %s32 = scalar_select %p29, %s31, %s22
      %p33 = scmp.ge.s32.totalorder %s32, 2
      %s34 = scalar_select %p33, 0, %s32
      %s35 = sadd.s32 %s22, %s23
      %s36 = sadd.s32 %s34, %s30
      %s37 = ssub.s32 %s35, %s36
      %p38 = scmp.eq.s32.totalorder %s37, 0
      %s40 = sadd.s32 %s39, 1
      %s41 = scalar_select %p38, %s39, %s40
      %p44 = pneg %p38
      %p45 = scmp.eq.s32.totalorder %s15, 1
      %p46 = por %p44, %p45
      %p47 = scmp.ne.s32.totalorder %s39, %s42
      %p48 = scmp.eq.s32.totalorder %s15, 0
      %p49 = por %p47, %p48
      %p50 = scmp.ne.s32.totalorder %s39, %s42
      %p51 = scmp.eq.s32.totalorder %s20, 1
      %p52 = por %p50, %p51
      %p53 = scmp.ne.s32.totalorder %s42, %s43
      %p54 = scmp.eq.s32.totalorder %s20, 0
      %p55 = por %p53, %p54
      %p56 = scmp.ne.s32.totalorder %s42, %s43
      %p57 = scmp.eq.s32.totalorder %s21, 1
      %p58 = por %p56, %p57
      %p60 = scmp.ne.s32.totalorder %s43, %s59
      %p61 = scmp.eq.s32.totalorder %s21, 0
      %p62 = por %p60, %p61
      %s64 = sadd.s32 %s63, 1
      %p67 = scmp.eq.s32.totalorder %s15, 1
      %p68 = scmp.ne.s32.totalorder %s63, %s65
      %p69 = scmp.eq.s32.totalorder %s15, 0
      %p70 = por %p68, %p69
      %p71 = scmp.ne.s32.totalorder %s63, %s65
      %p72 = scmp.eq.s32.totalorder %s20, 1
      %p73 = por %p71, %p72
      %p74 = scmp.ne.s32.totalorder %s65, %s66
      %p75 = scmp.eq.s32.totalorder %s20, 0
      %p76 = por %p74, %p75
      %p77 = scmp.ne.s32.totalorder %s65, %s66
      %p78 = scmp.eq.s32.totalorder %s21, 1
      %p79 = por %p77, %p78
      %p81 = scmp.ne.s32.totalorder %s66, %s80
      %p82 = scmp.eq.s32.totalorder %s21, 0
      %p83 = por %p81, %p82
      %s84 = ssub.s32 %s22, %s34
      %p85 = scmp.eq.s32.totalorder %s84, 0
      %s87 = sadd.s32 %s86, 1
      %s88 = scalar_select %p85, %s86, %s87
      %p91 = pneg %p85
      %p92 = scmp.eq.s32.totalorder %s15, 1
      %p93 = por %p91, %p92
      %p94 = scmp.ne.s32.totalorder %s86, %s89
      %p95 = scmp.eq.s32.totalorder %s15, 0
      %p96 = por %p94, %p95
      %p97 = scmp.ne.s32.totalorder %s86, %s89
      %p98 = scmp.eq.s32.totalorder %s20, 1
      %p99 = por %p97, %p98
      %p100 = scmp.ne.s32.totalorder %s89, %s90
      %p101 = scmp.eq.s32.totalorder %s20, 0
      %p102 = por %p100, %p101
      %p103 = scmp.ne.s32.totalorder %s89, %s90
      %p104 = scmp.eq.s32.totalorder %s21, 1
      %p105 = por %p103, %p104
      %p107 = scmp.ne.s32.totalorder %s90, %s106
      %p108 = scmp.eq.s32.totalorder %s21, 0
      %p109 = por %p107, %p108
      %p110 = scmp.le.s32.totalorder 1, %s15
      %p111 = scmp.lt.s32.totalorder %s15, 3
      %p112 = pnand %p110, %p111
      %p113 = pneg %p112
      // Predicated region
      $region9: #{tpu_custom_call.1} parent=5 // pred_check
        _
      $region10: #{tpu_custom_call.1} parent=5 // pred_check_branch
        %115 = sbr.rel (%p112) target = $region12
      $region11: #{tpu_custom_call.1} parent=5 // pred_region
        %s116 = ssub.s32 %s15, 1
        // Predicated region
        $region13: #{tpu_custom_call.1} parent=11 // pred_check
          %p117 = pneg %p76
        $region14: #{tpu_custom_call.1} parent=11 // pred_check_branch
          %119 = sbr.rel (%p117) target = $region16
        $region15: #{tpu_custom_call.1} parent=11 // pred_region
          %s121 = ssub.s32 4096, 4096
          %122 = vsyncadd [#allocation9], %s121
          %s123 = sshll.u32 [#allocation8], 4
          %s124 = int_to_ptr.vmem [resolvable:$true] %s123
          %129 = dma.hbm_to_vmem [thread:$0]  %s1, 4096, %s124, [#allocation9], 128, 128, 8
        $region16: #{tpu_custom_call.1} parent=11 // pred_fallthru
          _
      $region12: #{tpu_custom_call.1} parent=5 // pred_fallthru
        _
      %p130 = scmp.lt.s32.totalorder %s15, 2
      // Predicated region
      $region17: #{tpu_custom_call.1} parent=5 // pred_check
        %p131 = pneg %p130
      $region18: #{tpu_custom_call.1} parent=5 // pred_check_branch
        %133 = sbr.rel (%p131) target = $region20
      $region19: #{tpu_custom_call.1} parent=5 // pred_region
        // Predicated region
        $region21: #{tpu_custom_call.1} parent=19 // pred_check
          %p134 = pneg %p49
        $region22: #{tpu_custom_call.1} parent=19 // pred_check_branch
          %136 = sbr.rel (%p134) target = $region24
        $region23: #{tpu_custom_call.1} parent=19 // pred_region
          #allocation12 [shape = 'u32[6]{0}', space=smem, size = 0x18, scoped, tag = 'DMA stride descriptor']
          %s137 = sand.u32 %s39, 1
          %s138 = scalar_lea.sflag [#allocation6], %s137
          %s139 = sand.u32 %s39, 1
          %s140 = smul.addr %s139, 256
          %s141 = scalar_lea.vmem [#allocation5], %s140
          %s142 = sadd.s32 %s22, %s23
          %s143 = smul.u32 16, %s142
          %s145 = ssub.s32 4096, 4096
          %146 = vsyncadd %s138, %s145
          %s147 = smul.addr %s143, 2
          %s148 = smul.addr %s147, 64
          %s149 = scalar_lea.hbm %s0, %s148
          %s151 = sshll.u32 1, 14
          %s152 = sxor.u32 4294967295, %s151
          %s154 = sld [smem:[#allocation0]]
          %s155 = sadd.s32 2, %s154
          %s157 = sshll.u32 7, 26
          %s158 = sxor.u32 4294967295, %s157
          %s159 = sand.u32 0, %s158
          %s160 = sshll.u32 %s155, 26
          %s161 = sor.u32 %s159, %s160
          %s162 = sshll.u32 %s141, 4
          %s163 = int_to_ptr.vmem [resolvable:$true] %s162
          %169 = sst [smem:[#allocation12]] 4096
          %s170 = scalar_lea.smem [#allocation12], 1
          %171 = sst [smem:[%s170]] 2048
          %s172 = scalar_lea.smem [#allocation12], 2
          %173 = sst [smem:[%s172]] 16
          %s174 = scalar_lea.smem [#allocation12], 3
          %175 = sst [smem:[%s174]] 128
          %s176 = scalar_lea.smem [#allocation12], 4
          %177 = sst [smem:[%s176]] 128
          %s178 = scalar_lea.smem [#allocation12], 5
          %179 = sst [smem:[%s178]] 8
          %181 = dma.general %s149, 4096, %s163, %s138, [#allocation11], [#allocation12], %s161, 0
        $region24: #{tpu_custom_call.1} parent=19 // pred_fallthru
          _
      $region20: #{tpu_custom_call.1} parent=5 // pred_fallthru
        _
      %p182 = scmp.le.s32.totalorder 1, %s15
      %p183 = scmp.lt.s32.totalorder %s15, 3
      %p184 = pnand %p182, %p183
      %p185 = pneg %p184
      // Predicated region
      $region25: #{tpu_custom_call.1} parent=5 // pred_check
        _
      $region26: #{tpu_custom_call.1} parent=5 // pred_check_branch
        %187 = sbr.rel (%p184) target = $region28
      $region27: #{tpu_custom_call.1} parent=5 // pred_region
        %s188 = ssub.s32 %s15, 1
        %s189 = sand.u32 %s42, 1
        %s190 = scalar_lea.sflag [#allocation6], %s189
        %s191 = sand.u32 %s42, 1
        %s192 = smul.addr %s191, 256
        %s193 = scalar_lea.vmem [#allocation5], %s192
        // Predicated region
        $region29: #{tpu_custom_call.1} parent=27 // pred_check
          %p194 = pneg %p55
        $region30: #{tpu_custom_call.1} parent=27 // pred_check_branch
          %196 = sbr.rel (%p194) target = $region32
        $region31: #{tpu_custom_call.1} parent=27 // pred_region
          %197 = dma.done %s190, 4096
        $region32: #{tpu_custom_call.1} parent=27 // pred_fallthru
          _
        // Predicated region
        $region33: #{tpu_custom_call.1} parent=27 // pred_check
          %p198 = pneg %p76
        $region34: #{tpu_custom_call.1} parent=27 // pred_check_branch
          %200 = sbr.rel (%p198) target = $region36
        $region35: #{tpu_custom_call.1} parent=27 // pred_region
          %201 = dma.done [#allocation9], 4096
        $region36: #{tpu_custom_call.1} parent=27 // pred_fallthru
          _
        %s202 = sand.u32 %s42, 1
        %s203 = scalar_lea.sflag [#allocation6], %s202
        %s204 = sand.u32 %s42, 1
        %s205 = smul.addr %s204, 256
        %s206 = scalar_lea.vmem [#allocation5], %s205
        %p207 = pneg %p55
        %p208 = pneg %p52
        %p209 = pneg %p76
        %p210 = pneg %p73
        %p211 = pneg %p102
        %p212 = pneg %p99
        %s213 = sand.u32 %s89, 1
        %s214 = scalar_lea.sflag [#allocation7], %s213
        %s215 = sand.u32 %s89, 1
        %s216 = smul.addr %s215, 8
        %s217 = scalar_lea.vmem [#allocation10], %s216
        %s218 = sadd.s32 %s24, %s25
        %s219 = smul.u32 16, %s218
        %p220 = scmp.eq.s32.totalorder %s25, 0
        // Predicated region
        $region37: #{tpu_custom_call.1} parent=27 // pred_check
          %p221 = pneg %p220
        $region38: #{tpu_custom_call.1} parent=27 // pred_check_branch
          %223 = sbr.rel (%p221) target = $region40
        $region39: #{tpu_custom_call.1} parent=27 // pred_region
          %224 = vst [vmem:[#allocation2] sm:$0xff] 0.0
          %225 = vst [vmem:[#allocation2 + $0x8] sm:$0xff] 0.0
          %226 = vst [vmem:[#allocation2 + $0x10] sm:$0xff] 0.0
          %227 = vst [vmem:[#allocation2 + $0x18] sm:$0xff] 0.0
          %228 = vst [vmem:[#allocation2 + $0x20] sm:$0xff] 0.0
          %229 = vst [vmem:[#allocation2 + $0x28] sm:$0xff] 0.0
          %230 = vst [vmem:[#allocation2 + $0x30] sm:$0xff] 0.0
          %231 = vst [vmem:[#allocation2 + $0x38] sm:$0xff] 0.0
          %232 = vst [vmem:[#allocation2 + $0x40] sm:$0xff] 0.0
          %233 = vst [vmem:[#allocation2 + $0x48] sm:$0xff] 0.0
          %234 = vst [vmem:[#allocation2 + $0x50] sm:$0xff] 0.0
          %235 = vst [vmem:[#allocation2 + $0x58] sm:$0xff] 0.0
          %236 = vst [vmem:[#allocation2 + $0x60] sm:$0xff] 0.0
          %237 = vst [vmem:[#allocation2 + $0x68] sm:$0xff] 0.0
          %238 = vst [vmem:[#allocation2 + $0x70] sm:$0xff] 0.0
          %239 = vst [vmem:[#allocation2 + $0x78] sm:$0xff] 0.0
          %240 = vst [vmem:[#allocation3] sm:$0xff] 0.0
          %241 = vst [vmem:[#allocation3 + $0x8] sm:$0xff] 0.0
          %242 = vst [vmem:[#allocation3 + $0x10] sm:$0xff] 0.0
          %243 = vst [vmem:[#allocation3 + $0x18] sm:$0xff] 0.0
          %244 = vst [vmem:[#allocation3 + $0x20] sm:$0xff] 0.0
          %245 = vst [vmem:[#allocation3 + $0x28] sm:$0xff] 0.0
          %246 = vst [vmem:[#allocation3 + $0x30] sm:$0xff] 0.0
          %247 = vst [vmem:[#allocation3 + $0x38] sm:$0xff] 0.0
          %248 = vst [vmem:[#allocation3 + $0x40] sm:$0xff] 0.0
          %249 = vst [vmem:[#allocation3 + $0x48] sm:$0xff] 0.0
          %250 = vst [vmem:[#allocation3 + $0x50] sm:$0xff] 0.0
          %251 = vst [vmem:[#allocation3 + $0x58] sm:$0xff] 0.0
          %252 = vst [vmem:[#allocation3 + $0x60] sm:$0xff] 0.0
          %253 = vst [vmem:[#allocation3 + $0x68] sm:$0xff] 0.0
          %254 = vst [vmem:[#allocation3 + $0x70] sm:$0xff] 0.0
          %255 = vst [vmem:[#allocation3 + $0x78] sm:$0xff] 0.0
          %256 = vst [vmem:[#allocation4] sm:$0xff] 0.0
          %257 = vst [vmem:[#allocation4 + $0x8] sm:$0xff] 0.0
          %258 = vst [vmem:[#allocation4 + $0x10] sm:$0xff] 0.0
          %259 = vst [vmem:[#allocation4 + $0x18] sm:$0xff] 0.0
          %260 = vst [vmem:[#allocation4 + $0x20] sm:$0xff] 0.0
          %261 = vst [vmem:[#allocation4 + $0x28] sm:$0xff] 0.0
          %262 = vst [vmem:[#allocation4 + $0x30] sm:$0xff] 0.0
          %263 = vst [vmem:[#allocation4 + $0x38] sm:$0xff] 0.0
          %264 = vst [vmem:[#allocation4 + $0x40] sm:$0xff] 0.0
          %265 = vst [vmem:[#allocation4 + $0x48] sm:$0xff] 0.0
          %266 = vst [vmem:[#allocation4 + $0x50] sm:$0xff] 0.0
          %267 = vst [vmem:[#allocation4 + $0x58] sm:$0xff] 0.0
          %268 = vst [vmem:[#allocation4 + $0x60] sm:$0xff] 0.0
          %269 = vst [vmem:[#allocation4 + $0x68] sm:$0xff] 0.0
          %270 = vst [vmem:[#allocation4 + $0x70] sm:$0xff] 0.0
          %271 = vst [vmem:[#allocation4 + $0x78] sm:$0xff] 0.0
        $region40: #{tpu_custom_call.1} parent=27 // pred_fallthru
          _
        %v272 = vld [vmem:[#allocation8] sm:$0xff]
        %v273 = vld [vmem:[#allocation8 + $0x8] sm:$0xff]
        %v274 = vld [vmem:[#allocation8 + $0x10] sm:$0xff]
        %v275 = vld [vmem:[#allocation8 + $0x18] sm:$0xff]
        %v276 = vld [vmem:[#allocation8 + $0x20] sm:$0xff]
        %v277 = vld [vmem:[#allocation8 + $0x28] sm:$0xff]
        %v278 = vld [vmem:[#allocation8 + $0x30] sm:$0xff]
        %v279 = vld [vmem:[#allocation8 + $0x38] sm:$0xff]
        %v280 = vld [vmem:[#allocation8 + $0x40] sm:$0xff]
        %v281 = vld [vmem:[#allocation8 + $0x48] sm:$0xff]
        %v282 = vld [vmem:[#allocation8 + $0x50] sm:$0xff]
        %v283 = vld [vmem:[#allocation8 + $0x58] sm:$0xff]
        %v284 = vld [vmem:[#allocation8 + $0x60] sm:$0xff]
        %v285 = vld [vmem:[#allocation8 + $0x68] sm:$0xff]
        %v286 = vld [vmem:[#allocation8 + $0x70] sm:$0xff]
        %v287 = vld [vmem:[#allocation8 + $0x78] sm:$0xff]
        %v288 = vld [vmem:[#allocation8 + $0x80] sm:$0xff]
        %v289 = vld [vmem:[#allocation8 + $0x88] sm:$0xff]
        %v290 = vld [vmem:[#allocation8 + $0x90] sm:$0xff]
        %v291 = vld [vmem:[#allocation8 + $0x98] sm:$0xff]
        %v292 = vld [vmem:[#allocation8 + $0xa0] sm:$0xff]
        %v293 = vld [vmem:[#allocation8 + $0xa8] sm:$0xff]
        %v294 = vld [vmem:[#allocation8 + $0xb0] sm:$0xff]
        %v295 = vld [vmem:[#allocation8 + $0xb8] sm:$0xff]
        %v296 = vld [vmem:[#allocation8 + $0xc0] sm:$0xff]
        %v297 = vld [vmem:[#allocation8 + $0xc8] sm:$0xff]
        %v298 = vld [vmem:[#allocation8 + $0xd0] sm:$0xff]
        %v299 = vld [vmem:[#allocation8 + $0xd8] sm:$0xff]
        %v300 = vld [vmem:[#allocation8 + $0xe0] sm:$0xff]
        %v301 = vld [vmem:[#allocation8 + $0xe8] sm:$0xff]
        %v302 = vld [vmem:[#allocation8 + $0xf0] sm:$0xff]
        %v303 = vld [vmem:[#allocation8 + $0xf8] sm:$0xff]
        %v304 = vld [vmem:[%s193] sm:$0xff]
        %v305 = vld [vmem:[%s193 + $0x8] sm:$0xff]
        %v306 = vld [vmem:[%s193 + $0x10] sm:$0xff]
        %v307 = vld [vmem:[%s193 + $0x18] sm:$0xff]
        %v308 = vld [vmem:[%s193 + $0x20] sm:$0xff]
        %v309 = vld [vmem:[%s193 + $0x28] sm:$0xff]
        %v310 = vld [vmem:[%s193 + $0x30] sm:$0xff]
        %v311 = vld [vmem:[%s193 + $0x38] sm:$0xff]
        %v312 = vld [vmem:[%s193 + $0x40] sm:$0xff]
        %v313 = vld [vmem:[%s193 + $0x48] sm:$0xff]
        %v314 = vld [vmem:[%s193 + $0x50] sm:$0xff]
        %v315 = vld [vmem:[%s193 + $0x58] sm:$0xff]
        %v316 = vld [vmem:[%s193 + $0x60] sm:$0xff]
        %v317 = vld [vmem:[%s193 + $0x68] sm:$0xff]
        %v318 = vld [vmem:[%s193 + $0x70] sm:$0xff]
        %v319 = vld [vmem:[%s193 + $0x78] sm:$0xff]
        %v320 = vld [vmem:[%s193 + $0x80] sm:$0xff]
        %v321 = vld [vmem:[%s193 + $0x88] sm:$0xff]
        %v322 = vld [vmem:[%s193 + $0x90] sm:$0xff]
        %v323 = vld [vmem:[%s193 + $0x98] sm:$0xff]
        %v324 = vld [vmem:[%s193 + $0xa0] sm:$0xff]
        %v325 = vld [vmem:[%s193 + $0xa8] sm:$0xff]
        %v326 = vld [vmem:[%s193 + $0xb0] sm:$0xff]
        %v327 = vld [vmem:[%s193 + $0xb8] sm:$0xff]
        %v328 = vld [vmem:[%s193 + $0xc0] sm:$0xff]
        %v329 = vld [vmem:[%s193 + $0xc8] sm:$0xff]
        %v330 = vld [vmem:[%s193 + $0xd0] sm:$0xff]
        %v331 = vld [vmem:[%s193 + $0xd8] sm:$0xff]
        %v332 = vld [vmem:[%s193 + $0xe0] sm:$0xff]
        %v333 = vld [vmem:[%s193 + $0xe8] sm:$0xff]
        %v334 = vld [vmem:[%s193 + $0xf0] sm:$0xff]
        %v335 = vld [vmem:[%s193 + $0xf8] sm:$0xff]
        %v368 = vunpack.c.l.b16 %v304
        %v369 = vunpack.c.h.b16 %v304
        %v370 = vunpack.c.l.b16 %v305
        %v371 = vunpack.c.h.b16 %v305
        %v372 = vunpack.c.l.b16 %v306
        %v373 = vunpack.c.h.b16 %v306
        %v374 = vunpack.c.l.b16 %v307
        %v375 = vunpack.c.h.b16 %v307
        %v376 = vunpack.c.l.b16 %v308
        %v377 = vunpack.c.h.b16 %v308
        %v378 = vunpack.c.l.b16 %v309
        %v379 = vunpack.c.h.b16 %v309
        %v380 = vunpack.c.l.b16 %v310
        %v381 = vunpack.c.h.b16 %v310
        %v382 = vunpack.c.l.b16 %v311
        %v383 = vunpack.c.h.b16 %v311
        %v384 = vunpack.c.l.b16 %v312
        %v385 = vunpack.c.h.b16 %v312
        %v386 = vunpack.c.l.b16 %v313
        %v387 = vunpack.c.h.b16 %v313
        %v388 = vunpack.c.l.b16 %v314
        %v389 = vunpack.c.h.b16 %v314
        %v390 = vunpack.c.l.b16 %v315
        %v391 = vunpack.c.h.b16 %v315
        %v392 = vunpack.c.l.b16 %v316
        %v393 = vunpack.c.h.b16 %v316
        %v394 = vunpack.c.l.b16 %v317
        %v395 = vunpack.c.h.b16 %v317
        %v396 = vunpack.c.l.b16 %v318
        %v397 = vunpack.c.h.b16 %v318
        %v398 = vunpack.c.l.b16 %v319
        %v399 = vunpack.c.h.b16 %v319
        %v400 = vunpack.c.l.b16 %v320
        %v401 = vunpack.c.h.b16 %v320
        %v402 = vunpack.c.l.b16 %v321
        %v403 = vunpack.c.h.b16 %v321
        %v404 = vunpack.c.l.b16 %v322
        %v405 = vunpack.c.h.b16 %v322
        %v406 = vunpack.c.l.b16 %v323
        %v407 = vunpack.c.h.b16 %v323
        %v408 = vunpack.c.l.b16 %v324
        %v409 = vunpack.c.h.b16 %v324
        %v410 = vunpack.c.l.b16 %v325
        %v411 = vunpack.c.h.b16 %v325
        %v412 = vunpack.c.l.b16 %v326
        %v413 = vunpack.c.h.b16 %v326
        %v414 = vunpack.c.l.b16 %v327
        %v415 = vunpack.c.h.b16 %v327
        %v416 = vunpack.c.l.b16 %v328
        %v417 = vunpack.c.h.b16 %v328
        %v418 = vunpack.c.l.b16 %v329
        %v419 = vunpack.c.h.b16 %v329
        %v420 = vunpack.c.l.b16 %v330
        %v421 = vunpack.c.h.b16 %v330
        %v422 = vunpack.c.l.b16 %v331
        %v423 = vunpack.c.h.b16 %v331
        %v424 = vunpack.c.l.b16 %v332
        %v425 = vunpack.c.h.b16 %v332
        %v426 = vunpack.c.l.b16 %v333
        %v427 = vunpack.c.h.b16 %v333
        %v428 = vunpack.c.l.b16 %v334
        %v429 = vunpack.c.h.b16 %v334
        %v430 = vunpack.c.l.b16 %v335
        %v431 = vunpack.c.h.b16 %v335
        %v432 = vpack.c.b16 %v370, %v368
        %v433 = vpack.c.b16 %v371, %v369
        %v434 = vpack.c.b16 %v374, %v372
        %v435 = vpack.c.b16 %v375, %v373
        %v436 = vpack.c.b16 %v378, %v376
        %v437 = vpack.c.b16 %v379, %v377
        %v438 = vpack.c.b16 %v382, %v380
        %v439 = vpack.c.b16 %v383, %v381
        %v440 = vpack.c.b16 %v386, %v384
        %v441 = vpack.c.b16 %v387, %v385
        %v442 = vpack.c.b16 %v390, %v388
        %v443 = vpack.c.b16 %v391, %v389
        %v444 = vpack.c.b16 %v394, %v392
        %v445 = vpack.c.b16 %v395, %v393
        %v446 = vpack.c.b16 %v398, %v396
        %v447 = vpack.c.b16 %v399, %v397
        %v448 = vpack.c.b16 %v402, %v400
        %v449 = vpack.c.b16 %v403, %v401
        %v450 = vpack.c.b16 %v406, %v404
        %v451 = vpack.c.b16 %v407, %v405
        %v452 = vpack.c.b16 %v410, %v408
        %v453 = vpack.c.b16 %v411, %v409
        %v454 = vpack.c.b16 %v414, %v412
        %v455 = vpack.c.b16 %v415, %v413
        %v456 = vpack.c.b16 %v418, %v416
        %v457 = vpack.c.b16 %v419, %v417
        %v458 = vpack.c.b16 %v422, %v420
        %v459 = vpack.c.b16 %v423, %v421
        %v460 = vpack.c.b16 %v426, %v424
        %v461 = vpack.c.b16 %v427, %v425
        %v462 = vpack.c.b16 %v430, %v428
        %v463 = vpack.c.b16 %v431, %v429
        %v528 = vunpack.c.l.b16 %v272
        %v529 = vunpack.c.h.b16 %v272
        %v530 = vunpack.c.l.b16 %v273
        %v531 = vunpack.c.h.b16 %v273
        %v532 = vunpack.c.l.b16 %v274
        %v533 = vunpack.c.h.b16 %v274
        %v534 = vunpack.c.l.b16 %v275
        %v535 = vunpack.c.h.b16 %v275
        %v536 = vunpack.c.l.b16 %v276
        %v537 = vunpack.c.h.b16 %v276
        %v538 = vunpack.c.l.b16 %v277
        %v539 = vunpack.c.h.b16 %v277
        %v540 = vunpack.c.l.b16 %v278
        %v541 = vunpack.c.h.b16 %v278
        %v542 = vunpack.c.l.b16 %v279
        %v543 = vunpack.c.h.b16 %v279
        %v544 = vunpack.c.l.b16 %v280
        %v545 = vunpack.c.h.b16 %v280
        %v546 = vunpack.c.l.b16 %v281
        %v547 = vunpack.c.h.b16 %v281
        %v548 = vunpack.c.l.b16 %v282
        %v549 = vunpack.c.h.b16 %v282
        %v550 = vunpack.c.l.b16 %v283
        %v551 = vunpack.c.h.b16 %v283
        %v552 = vunpack.c.l.b16 %v284
        %v553 = vunpack.c.h.b16 %v284
        %v554 = vunpack.c.l.b16 %v285
        %v555 = vunpack.c.h.b16 %v285
        %v556 = vunpack.c.l.b16 %v286
        %v557 = vunpack.c.h.b16 %v286
        %v558 = vunpack.c.l.b16 %v287
        %v559 = vunpack.c.h.b16 %v287
        %v560 = vunpack.c.l.b16 %v288
        %v561 = vunpack.c.h.b16 %v288
        %v562 = vunpack.c.l.b16 %v289
        %v563 = vunpack.c.h.b16 %v289
        %v564 = vunpack.c.l.b16 %v290
        %v565 = vunpack.c.h.b16 %v290
        %v566 = vunpack.c.l.b16 %v291
        %v567 = vunpack.c.h.b16 %v291
        %v568 = vunpack.c.l.b16 %v292
        %v569 = vunpack.c.h.b16 %v292
        %v570 = vunpack.c.l.b16 %v293
        %v571 = vunpack.c.h.b16 %v293
        %v572 = vunpack.c.l.b16 %v294
        %v573 = vunpack.c.h.b16 %v294
        %v574 = vunpack.c.l.b16 %v295
        %v575 = vunpack.c.h.b16 %v295
        %v576 = vunpack.c.l.b16 %v296
        %v577 = vunpack.c.h.b16 %v296
        %v578 = vunpack.c.l.b16 %v297
        %v579 = vunpack.c.h.b16 %v297
        %v580 = vunpack.c.l.b16 %v298
        %v581 = vunpack.c.h.b16 %v298
        %v582 = vunpack.c.l.b16 %v299
        %v583 = vunpack.c.h.b16 %v299
        %v584 = vunpack.c.l.b16 %v300
        %v585 = vunpack.c.h.b16 %v300
        %v586 = vunpack.c.l.b16 %v301
        %v587 = vunpack.c.h.b16 %v301
        %v588 = vunpack.c.l.b16 %v302
        %v589 = vunpack.c.h.b16 %v302
        %v590 = vunpack.c.l.b16 %v303
        %v591 = vunpack.c.h.b16 %v303
        %v592 = vpack.c.b16 %v530, %v528
        %v593 = vpack.c.b16 %v531, %v529
        %v594 = vpack.c.b16 %v534, %v532
        %v595 = vpack.c.b16 %v535, %v533
        %v596 = vpack.c.b16 %v538, %v536
        %v597 = vpack.c.b16 %v539, %v537
        %v598 = vpack.c.b16 %v542, %v540
        %v599 = vpack.c.b16 %v543, %v541
        %v600 = vpack.c.b16 %v546, %v544
        %v601 = vpack.c.b16 %v547, %v545
        %v602 = vpack.c.b16 %v550, %v548
        %v603 = vpack.c.b16 %v551, %v549
        %v604 = vpack.c.b16 %v554, %v552
        %v605 = vpack.c.b16 %v555, %v553
        %v606 = vpack.c.b16 %v558, %v556
        %v607 = vpack.c.b16 %v559, %v557
        %v608 = vpack.c.b16 %v562, %v560
        %v609 = vpack.c.b16 %v563, %v561
        %v610 = vpack.c.b16 %v566, %v564
        %v611 = vpack.c.b16 %v567, %v565
        %v612 = vpack.c.b16 %v570, %v568
        %v613 = vpack.c.b16 %v571, %v569
        %v614 = vpack.c.b16 %v574, %v572
        %v615 = vpack.c.b16 %v575, %v573
        %v616 = vpack.c.b16 %v578, %v576
        %v617 = vpack.c.b16 %v579, %v577
        %v618 = vpack.c.b16 %v582, %v580
        %v619 = vpack.c.b16 %v583, %v581
        %v620 = vpack.c.b16 %v586, %v584
        %v621 = vpack.c.b16 %v587, %v585
        %v622 = vpack.c.b16 %v590, %v588
        %v623 = vpack.c.b16 %v591, %v589
        %656 = vmatprep.subr.bf16.mxu0 %v593
        %657 = vmatpush1.bf16.msra.mxu0 %v592
        %658 = vmatprep.subr.bf16.mxu0 %v595
        %659 = vmatpush1.bf16.msra.mxu0 %v594
        %660 = vmatprep.subr.bf16.mxu0 %v597
        %661 = vmatpush1.bf16.msra.mxu0 %v596
        %662 = vmatprep.subr.bf16.mxu0 %v599
        %663 = vmatpush1.bf16.msra.mxu0 %v598
        %664 = vmatprep.subr.bf16.mxu0 %v601
        %665 = vmatpush1.bf16.msra.mxu0 %v600
        %666 = vmatprep.subr.bf16.mxu0 %v603
        %667 = vmatpush1.bf16.msra.mxu0 %v602
        %668 = vmatprep.subr.bf16.mxu0 %v605
        %669 = vmatpush1.bf16.msra.mxu0 %v604
        %670 = vmatprep.subr.bf16.mxu0 %v607
        %671 = vmatpush1.bf16.msra.mxu0 %v606
        %672 = vmatprep.subr.bf16.mxu0 %v609
        %673 = vmatpush1.bf16.msra.mxu0 %v608
        %674 = vmatprep.subr.bf16.mxu0 %v611
        %675 = vmatpush1.bf16.msra.mxu0 %v610
        %676 = vmatprep.subr.bf16.mxu0 %v613
        %677 = vmatpush1.bf16.msra.mxu0 %v612
        %678 = vmatprep.subr.bf16.mxu0 %v615
        %679 = vmatpush1.bf16.msra.mxu0 %v614
        %680 = vmatprep.subr.bf16.mxu0 %v617
        %681 = vmatpush1.bf16.msra.mxu0 %v616
        %682 = vmatprep.subr.bf16.mxu0 %v619
        %683 = vmatpush1.bf16.msra.mxu0 %v618
        %684 = vmatprep.subr.bf16.mxu0 %v621
        %685 = vmatpush1.bf16.msra.mxu0 %v620
        %686 = vmatprep.subr.bf16.mxu0 %v623
        %687 = vmatpush1.bf16.msra.mxu0 %v622
        %688 = vmatprep.mubr.bf16.mxu0 %v433
        %689 = vmatmul.mubr.bf16.gmra.mrb[0].mxu0 %v432
        %v690 = vpop.f32.mrb[0].mxu0
        %v691 = vadd.f32 0.0, %v690
        %v692 = vpop.f32.mrb[0].mxu0
        %v693 = vadd.f32 0.0, %v692
        %v694 = vpop.f32.mrb[0].mxu0
        %v695 = vadd.f32 0.0, %v694
        %v696 = vpop.f32.mrb[0].mxu0
        %v697 = vadd.f32 0.0, %v696
        %698 = vmatprep.mubr.bf16.mxu0 %v435
        %699 = vmatmul.mubr.bf16.gmra.mrb[0].mxu0 %v434
        %v700 = vpop.f32.mrb[0].mxu0
        %v701 = vadd.f32 0.0, %v700
        %v702 = vpop.f32.mrb[0].mxu0
        %v703 = vadd.f32 0.0, %v702
        %v704 = vpop.f32.mrb[0].mxu0
        %v705 = vadd.f32 0.0, %v704
        %v706 = vpop.f32.mrb[0].mxu0
        %v707 = vadd.f32 0.0, %v706
        %708 = vmatprep.mubr.bf16.mxu0 %v437
        %709 = vmatmul.mubr.bf16.gmra.mrb[0].mxu0 %v436
        %v710 = vpop.f32.mrb[0].mxu0
        %v711 = vadd.f32 0.0, %v710
        %v712 = vpop.f32.mrb[0].mxu0
        %v713 = vadd.f32 0.0, %v712
        %v714 = vpop.f32.mrb[0].mxu0
        %v715 = vadd.f32 0.0, %v714
        %v716 = vpop.f32.mrb[0].mxu0
        %v717 = vadd.f32 0.0, %v716
        %718 = vmatprep.mubr.bf16.mxu0 %v439
        %719 = vmatmul.mubr.bf16.gmra.mrb[0].mxu0 %v438
        %v720 = vpop.f32.mrb[0].mxu0
        %v721 = vadd.f32 0.0, %v720
        %v722 = vpop.f32.mrb[0].mxu0
        %v723 = vadd.f32 0.0, %v722
        %v724 = vpop.f32.mrb[0].mxu0
        %v725 = vadd.f32 0.0, %v724
        %v726 = vpop.f32.mrb[0].mxu0
        %v727 = vadd.f32 0.0, %v726
        %728 = vmatprep.mubr.bf16.mxu0 %v441
        %729 = vmatmul.mubr.bf16.gmra.mrb[0].mxu0 %v440
        %v730 = vpop.f32.mrb[0].mxu0
        %v731 = vadd.f32 0.0, %v730
        %v732 = vpop.f32.mrb[0].mxu0
        %v733 = vadd.f32 0.0, %v732
        %v734 = vpop.f32.mrb[0].mxu0
        %v735 = vadd.f32 0.0, %v734
        %v736 = vpop.f32.mrb[0].mxu0
        %v737 = vadd.f32 0.0, %v736
        %738 = vmatprep.mubr.bf16.mxu0 %v443
        %739 = vmatmul.mubr.bf16.gmra.mrb[0].mxu0 %v442
        %v740 = vpop.f32.mrb[0].mxu0
        %v741 = vadd.f32 0.0, %v740
        %v742 = vpop.f32.mrb[0].mxu0
        %v743 = vadd.f32 0.0, %v742
        %v744 = vpop.f32.mrb[0].mxu0
        %v745 = vadd.f32 0.0, %v744
        %v746 = vpop.f32.mrb[0].mxu0
        %v747 = vadd.f32 0.0, %v746
        %748 = vmatprep.mubr.bf16.mxu0 %v445
        %749 = vmatmul.mubr.bf16.gmra.mrb[0].mxu0 %v444
        %v750 = vpop.f32.mrb[0].mxu0
        %v751 = vadd.f32 0.0, %v750
        %v752 = vpop.f32.mrb[0].mxu0
        %v753 = vadd.f32 0.0, %v752
        %v754 = vpop.f32.mrb[0].mxu0
        %v755 = vadd.f32 0.0, %v754
        %v756 = vpop.f32.mrb[0].mxu0
        %v757 = vadd.f32 0.0, %v756
        %758 = vmatprep.mubr.bf16.mxu0 %v447
        %759 = vmatmul.mubr.bf16.gmra.mrb[0].mxu0 %v446
        %v760 = vpop.f32.mrb[0].mxu0
        %v761 = vadd.f32 0.0, %v760
        %v762 = vpop.f32.mrb[0].mxu0
        %v763 = vadd.f32 0.0, %v762
        %v764 = vpop.f32.mrb[0].mxu0
        %v765 = vadd.f32 0.0, %v764
        %v766 = vpop.f32.mrb[0].mxu0
        %v767 = vadd.f32 0.0, %v766
        %768 = vmatprep.mubr.bf16.mxu0 %v449
        %769 = vmatmul.mubr.bf16.gmra.mrb[0].mxu0 %v448
        %v770 = vpop.f32.mrb[0].mxu0
        %v771 = vadd.f32 0.0, %v770
        %v772 = vpop.f32.mrb[0].mxu0
        %v773 = vadd.f32 0.0, %v772
        %v774 = vpop.f32.mrb[0].mxu0
        %v775 = vadd.f32 0.0, %v774
        %v776 = vpop.f32.mrb[0].mxu0
        %v777 = vadd.f32 0.0, %v776
        %778 = vmatprep.mubr.bf16.mxu0 %v451
        %779 = vmatmul.mubr.bf16.gmra.mrb[0].mxu0 %v450
        %v780 = vpop.f32.mrb[0].mxu0
        %v781 = vadd.f32 0.0, %v780
        %v782 = vpop.f32.mrb[0].mxu0
        %v783 = vadd.f32 0.0, %v782
        %v784 = vpop.f32.mrb[0].mxu0
        %v785 = vadd.f32 0.0, %v784
        %v786 = vpop.f32.mrb[0].mxu0
        %v787 = vadd.f32 0.0, %v786
        %788 = vmatprep.mubr.bf16.mxu0 %v453
        %789 = vmatmul.mubr.bf16.gmra.mrb[0].mxu0 %v452
        %v790 = vpop.f32.mrb[0].mxu0
        %v791 = vadd.f32 0.0, %v790
        %v792 = vpop.f32.mrb[0].mxu0
        %v793 = vadd.f32 0.0, %v792
        %v794 = vpop.f32.mrb[0].mxu0
        %v795 = vadd.f32 0.0, %v794
        %v796 = vpop.f32.mrb[0].mxu0
        %v797 = vadd.f32 0.0, %v796
        %798 = vmatprep.mubr.bf16.mxu0 %v455
        %799 = vmatmul.mubr.bf16.gmra.mrb[0].mxu0 %v454
        %v800 = vpop.f32.mrb[0].mxu0
        %v801 = vadd.f32 0.0, %v800
        %v802 = vpop.f32.mrb[0].mxu0
        %v803 = vadd.f32 0.0, %v802
        %v804 = vpop.f32.mrb[0].mxu0
        %v805 = vadd.f32 0.0, %v804
        %v806 = vpop.f32.mrb[0].mxu0
        %v807 = vadd.f32 0.0, %v806
        %808 = vmatprep.mubr.bf16.mxu0 %v457
        %809 = vmatmul.mubr.bf16.gmra.mrb[0].mxu0 %v456
        %v810 = vpop.f32.mrb[0].mxu0
        %v811 = vadd.f32 0.0, %v810
        %v812 = vpop.f32.mrb[0].mxu0
        %v813 = vadd.f32 0.0, %v812
        %v814 = vpop.f32.mrb[0].mxu0
        %v815 = vadd.f32 0.0, %v814
        %v816 = vpop.f32.mrb[0].mxu0
        %v817 = vadd.f32 0.0, %v816
        %818 = vmatprep.mubr.bf16.mxu0 %v459
        %819 = vmatmul.mubr.bf16.gmra.mrb[0].mxu0 %v458
        %v820 = vpop.f32.mrb[0].mxu0
        %v821 = vadd.f32 0.0, %v820
        %v822 = vpop.f32.mrb[0].mxu0
        %v823 = vadd.f32 0.0, %v822
        %v824 = vpop.f32.mrb[0].mxu0
        %v825 = vadd.f32 0.0, %v824
        %v826 = vpop.f32.mrb[0].mxu0
        %v827 = vadd.f32 0.0, %v826
        %828 = vmatprep.mubr.bf16.mxu0 %v461
        %829 = vmatmul.mubr.bf16.gmra.mrb[0].mxu0 %v460
        %v830 = vpop.f32.mrb[0].mxu0
        %v831 = vadd.f32 0.0, %v830
        %v832 = vpop.f32.mrb[0].mxu0
        %v833 = vadd.f32 0.0, %v832
        %v834 = vpop.f32.mrb[0].mxu0
        %v835 = vadd.f32 0.0, %v834
        %v836 = vpop.f32.mrb[0].mxu0
        %v837 = vadd.f32 0.0, %v836
        %838 = vmatprep.mubr.bf16.mxu0 %v463
        %839 = vmatmul.mubr.bf16.gmra.mrb[0].mxu0 %v462
        %v840 = vpop.f32.mrb[0].mxu0
        %v841 = vadd.f32 0.0, %v840
        %v842 = vpop.f32.mrb[0].mxu0
        %v843 = vadd.f32 0.0, %v842
        %v844 = vpop.f32.mrb[0].mxu0
        %v845 = vadd.f32 0.0, %v844
        %v846 = vpop.f32.mrb[0].mxu0
        %v847 = vadd.f32 0.0, %v846
        %848 = vdwg.mxu0
        %v849 = vlaneseq
        %v850 = vand.u32 %v849, 127
        %vm851 = vcmp.eq.s32.totalorder %v850, 0
        %v852 = vsel %vm851, 1, 0
        %vm853 = vcmp.eq.s32.totalorder %v852, 1
        %v854 = vsel %vm853, 0.0, %v693
        %v855 = vsel %vm853, 0.0, %v697
        %v856 = vsel %vm853, 0.0, %v703
        %v857 = vsel %vm853, 0.0, %v707
        %v858 = vsel %vm853, 0.0, %v713
        %v859 = vsel %vm853, 0.0, %v717
        %v860 = vsel %vm853, 0.0, %v723
        %v861 = vsel %vm853, 0.0, %v727
        %v862 = vsel %vm853, 0.0, %v733
        %v863 = vsel %vm853, 0.0, %v737
        %v864 = vsel %vm853, 0.0, %v743
        %v865 = vsel %vm853, 0.0, %v747
        %v866 = vsel %vm853, 0.0, %v753
        %v867 = vsel %vm853, 0.0, %v757
        %v868 = vsel %vm853, 0.0, %v763
        %v869 = vsel %vm853, 0.0, %v767
        %v870 = vsel %vm853, 0.0, %v773
        %v871 = vsel %vm853, 0.0, %v777
        %v872 = vsel %vm853, 0.0, %v783
        %v873 = vsel %vm853, 0.0, %v787
        %v874 = vsel %vm853, 0.0, %v793
        %v875 = vsel %vm853, 0.0, %v797
        %v876 = vsel %vm853, 0.0, %v803
        %v877 = vsel %vm853, 0.0, %v807
        %v878 = vsel %vm853, 0.0, %v813
        %v879 = vsel %vm853, 0.0, %v817
        %v880 = vsel %vm853, 0.0, %v823
        %v881 = vsel %vm853, 0.0, %v827
        %v882 = vsel %vm853, 0.0, %v833
        %v883 = vsel %vm853, 0.0, %v837
        %v884 = vsel %vm853, 0.0, %v843
        %v885 = vsel %vm853, 0.0, %v847
        %v886 = vmul.f32 %v691, %v691
        %v887 = vmul.f32 %v695, %v695
        %v888 = vmul.f32 %v701, %v701
        %v889 = vmul.f32 %v705, %v705
        %v890 = vmul.f32 %v711, %v711
        %v891 = vmul.f32 %v715, %v715
        %v892 = vmul.f32 %v721, %v721
        %v893 = vmul.f32 %v725, %v725
        %v894 = vmul.f32 %v731, %v731
        %v895 = vmul.f32 %v735, %v735
        %v896 = vmul.f32 %v741, %v741
        %v897 = vmul.f32 %v745, %v745
        %v898 = vmul.f32 %v751, %v751
        %v899 = vmul.f32 %v755, %v755
        %v900 = vmul.f32 %v761, %v761
        %v901 = vmul.f32 %v765, %v765
        %v902 = vmul.f32 %v854, %v854
        %v903 = vmul.f32 %v855, %v855
        %v904 = vmul.f32 %v856, %v856
        %v905 = vmul.f32 %v857, %v857
        %v906 = vmul.f32 %v858, %v858
        %v907 = vmul.f32 %v859, %v859
        %v908 = vmul.f32 %v860, %v860
        %v909 = vmul.f32 %v861, %v861
        %v910 = vmul.f32 %v862, %v862
        %v911 = vmul.f32 %v863, %v863
        %v912 = vmul.f32 %v864, %v864
        %v913 = vmul.f32 %v865, %v865
        %v914 = vmul.f32 %v866, %v866
        %v915 = vmul.f32 %v867, %v867
        %v916 = vmul.f32 %v868, %v868
        %v917 = vmul.f32 %v869, %v869
        %v918 = vadd.f32 %v886, %v902
        %v919 = vadd.f32 %v887, %v903
        %v920 = vadd.f32 %v888, %v904
        %v921 = vadd.f32 %v889, %v905
        %v922 = vadd.f32 %v890, %v906
        %v923 = vadd.f32 %v891, %v907
        %v924 = vadd.f32 %v892, %v908
        %v925 = vadd.f32 %v893, %v909
        %v926 = vadd.f32 %v894, %v910
        %v927 = vadd.f32 %v895, %v911
        %v928 = vadd.f32 %v896, %v912
        %v929 = vadd.f32 %v897, %v913
        %v930 = vadd.f32 %v898, %v914
        %v931 = vadd.f32 %v899, %v915
        %v932 = vadd.f32 %v900, %v916
        %v933 = vadd.f32 %v901, %v917
        %v934 = vmax.f32 %v918, 1e-07
        %v935 = vmax.f32 %v919, 1e-07
        %v936 = vmax.f32 %v920, 1e-07
        %v937 = vmax.f32 %v921, 1e-07
        %v938 = vmax.f32 %v922, 1e-07
        %v939 = vmax.f32 %v923, 1e-07
        %v940 = vmax.f32 %v924, 1e-07
        %v941 = vmax.f32 %v925, 1e-07
        %v942 = vmax.f32 %v926, 1e-07
        %v943 = vmax.f32 %v927, 1e-07
        %v944 = vmax.f32 %v928, 1e-07
        %v945 = vmax.f32 %v929, 1e-07
        %v946 = vmax.f32 %v930, 1e-07
        %v947 = vmax.f32 %v931, 1e-07
        %v948 = vmax.f32 %v932, 1e-07
        %v949 = vmax.f32 %v933, 1e-07
        %v950 = vmul.f32 %v771, %v771
        %v951 = vmul.f32 %v775, %v775
        %v952 = vmul.f32 %v781, %v781
        %v953 = vmul.f32 %v785, %v785
        %v954 = vmul.f32 %v791, %v791
        %v955 = vmul.f32 %v795, %v795
        %v956 = vmul.f32 %v801, %v801
        %v957 = vmul.f32 %v805, %v805
        %v958 = vmul.f32 %v811, %v811
        %v959 = vmul.f32 %v815, %v815
        %v960 = vmul.f32 %v821, %v821
        %v961 = vmul.f32 %v825, %v825
        %v962 = vmul.f32 %v831, %v831
        %v963 = vmul.f32 %v835, %v835
        %v964 = vmul.f32 %v841, %v841
        %v965 = vmul.f32 %v845, %v845
        %v966 = vmul.f32 %v870, %v870
        %v967 = vmul.f32 %v871, %v871
        %v968 = vmul.f32 %v872, %v872
        %v969 = vmul.f32 %v873, %v873
        %v970 = vmul.f32 %v874, %v874
        %v971 = vmul.f32 %v875, %v875
        %v972 = vmul.f32 %v876, %v876
        %v973 = vmul.f32 %v877, %v877
        %v974 = vmul.f32 %v878, %v878
        %v975 = vmul.f32 %v879, %v879
        %v976 = vmul.f32 %v880, %v880
        %v977 = vmul.f32 %v881, %v881
        %v978 = vmul.f32 %v882, %v882
        %v979 = vmul.f32 %v883, %v883
        %v980 = vmul.f32 %v884, %v884
        %v981 = vmul.f32 %v885, %v885
        %v982 = vadd.f32 %v950, %v966
        %v983 = vadd.f32 %v951, %v967
        %v984 = vadd.f32 %v952, %v968
        %v985 = vadd.f32 %v953, %v969
        %v986 = vadd.f32 %v954, %v970
        %v987 = vadd.f32 %v955, %v971
        %v988 = vadd.f32 %v956, %v972
        %v989 = vadd.f32 %v957, %v973
        %v990 = vadd.f32 %v958, %v974
        %v991 = vadd.f32 %v959, %v975
        %v992 = vadd.f32 %v960, %v976
        %v993 = vadd.f32 %v961, %v977
        %v994 = vadd.f32 %v962, %v978
        %v995 = vadd.f32 %v963, %v979
        %v996 = vadd.f32 %v964, %v980
        %v997 = vadd.f32 %v965, %v981
        %v998 = vmax.f32 %v982, 1e-07
        %v999 = vmax.f32 %v983, 1e-07
        %v1000 = vmax.f32 %v984, 1e-07
        %v1001 = vmax.f32 %v985, 1e-07
        %v1002 = vmax.f32 %v986, 1e-07
        %v1003 = vmax.f32 %v987, 1e-07
        %v1004 = vmax.f32 %v988, 1e-07
        %v1005 = vmax.f32 %v989, 1e-07
        %v1006 = vmax.f32 %v990, 1e-07
        %v1007 = vmax.f32 %v991, 1e-07
        %v1008 = vmax.f32 %v992, 1e-07
        %v1009 = vmax.f32 %v993, 1e-07
        %v1010 = vmax.f32 %v994, 1e-07
        %v1011 = vmax.f32 %v995, 1e-07
        %v1012 = vmax.f32 %v996, 1e-07
        %v1013 = vmax.f32 %v997, 1e-07
        %v1014 = vrsqrt.pop %v934
        %v1015 = vmul.f32 %v934, %v1014
        %vm1016 = vcmp.eq.f32.partialorder %v934, inf
        %v1017 = vsel %vm1016, %v934, %v1015
        %vm1018 = vcmp.eq.f32.partialorder %v934, 0.0
        %v1019 = vand.u32 %v934, 2147483648
        %v1020 = vsel %vm1018, %v1019, %v1017
        %v1021 = vrsqrt.pop %v935
        %v1022 = vmul.f32 %v935, %v1021
        %vm1023 = vcmp.eq.f32.partialorder %v935, inf
        %v1024 = vsel %vm1023, %v935, %v1022
        %vm1025 = vcmp.eq.f32.partialorder %v935, 0.0
        %v1026 = vand.u32 %v935, 2147483648
        %v1027 = vsel %vm1025, %v1026, %v1024
        %v1028 = vrsqrt.pop %v936
        %v1029 = vmul.f32 %v936, %v1028
        %vm1030 = vcmp.eq.f32.partialorder %v936, inf
        %v1031 = vsel %vm1030, %v936, %v1029
        %vm1032 = vcmp.eq.f32.partialorder %v936, 0.0
        %v1033 = vand.u32 %v936, 2147483648
        %v1034 = vsel %vm1032, %v1033, %v1031
        %v1035 = vrsqrt.pop %v937
        %v1036 = vmul.f32 %v937, %v1035
        %vm1037 = vcmp.eq.f32.partialorder %v937, inf
        %v1038 = vsel %vm1037, %v937, %v1036
        %vm1039 = vcmp.eq.f32.partialorder %v937, 0.0
        %v1040 = vand.u32 %v937, 2147483648
        %v1041 = vsel %vm1039, %v1040, %v1038
        %v1042 = vrsqrt.pop %v938
        %v1043 = vmul.f32 %v938, %v1042
        %vm1044 = vcmp.eq.f32.partialorder %v938, inf
        %v1045 = vsel %vm1044, %v938, %v1043
        %vm1046 = vcmp.eq.f32.partialorder %v938, 0.0
        %v1047 = vand.u32 %v938, 2147483648
        %v1048 = vsel %vm1046, %v1047, %v1045
        %v1049 = vrsqrt.pop %v939
        %v1050 = vmul.f32 %v939, %v1049
        %vm1051 = vcmp.eq.f32.partialorder %v939, inf
        %v1052 = vsel %vm1051, %v939, %v1050
        %vm1053 = vcmp.eq.f32.partialorder %v939, 0.0
        %v1054 = vand.u32 %v939, 2147483648
        %v1055 = vsel %vm1053, %v1054, %v1052
        %v1056 = vrsqrt.pop %v940
        %v1057 = vmul.f32 %v940, %v1056
        %vm1058 = vcmp.eq.f32.partialorder %v940, inf
        %v1059 = vsel %vm1058, %v940, %v1057
        %vm1060 = vcmp.eq.f32.partialorder %v940, 0.0
        %v1061 = vand.u32 %v940, 2147483648
        %v1062 = vsel %vm1060, %v1061, %v1059
        %v1063 = vrsqrt.pop %v941
        %v1064 = vmul.f32 %v941, %v1063
        %vm1065 = vcmp.eq.f32.partialorder %v941, inf
        %v1066 = vsel %vm1065, %v941, %v1064
        %vm1067 = vcmp.eq.f32.partialorder %v941, 0.0
        %v1068 = vand.u32 %v941, 2147483648
        %v1069 = vsel %vm1067, %v1068, %v1066
        %v1070 = vrsqrt.pop %v942
        %v1071 = vmul.f32 %v942, %v1070
        %vm1072 = vcmp.eq.f32.partialorder %v942, inf
        %v1073 = vsel %vm1072, %v942, %v1071
        %vm1074 = vcmp.eq.f32.partialorder %v942, 0.0
        %v1075 = vand.u32 %v942, 2147483648
        %v1076 = vsel %vm1074, %v1075, %v1073
        %v1077 = vrsqrt.pop %v943
        %v1078 = vmul.f32 %v943, %v1077
        %vm1079 = vcmp.eq.f32.partialorder %v943, inf
        %v1080 = vsel %vm1079, %v943, %v1078
        %vm1081 = vcmp.eq.f32.partialorder %v943, 0.0
        %v1082 = vand.u32 %v943, 2147483648
        %v1083 = vsel %vm1081, %v1082, %v1080
        %v1084 = vrsqrt.pop %v944
        %v1085 = vmul.f32 %v944, %v1084
        %vm1086 = vcmp.eq.f32.partialorder %v944, inf
        %v1087 = vsel %vm1086, %v944, %v1085
        %vm1088 = vcmp.eq.f32.partialorder %v944, 0.0
        %v1089 = vand.u32 %v944, 2147483648
        %v1090 = vsel %vm1088, %v1089, %v1087
        %v1091 = vrsqrt.pop %v945
        %v1092 = vmul.f32 %v945, %v1091
        %vm1093 = vcmp.eq.f32.partialorder %v945, inf
        %v1094 = vsel %vm1093, %v945, %v1092
        %vm1095 = vcmp.eq.f32.partialorder %v945, 0.0
        %v1096 = vand.u32 %v945, 2147483648
        %v1097 = vsel %vm1095, %v1096, %v1094
        %v1098 = vrsqrt.pop %v946
        %v1099 = vmul.f32 %v946, %v1098
        %vm1100 = vcmp.eq.f32.partialorder %v946, inf
        %v1101 = vsel %vm1100, %v946, %v1099
        %vm1102 = vcmp.eq.f32.partialorder %v946, 0.0
        %v1103 = vand.u32 %v946, 2147483648
        %v1104 = vsel %vm1102, %v1103, %v1101
        %v1105 = vrsqrt.pop %v947
        %v1106 = vmul.f32 %v947, %v1105
        %vm1107 = vcmp.eq.f32.partialorder %v947, inf
        %v1108 = vsel %vm1107, %v947, %v1106
        %vm1109 = vcmp.eq.f32.partialorder %v947, 0.0
        %v1110 = vand.u32 %v947, 2147483648
        %v1111 = vsel %vm1109, %v1110, %v1108
        %v1112 = vrsqrt.pop %v948
        %v1113 = vmul.f32 %v948, %v1112
        %vm1114 = vcmp.eq.f32.partialorder %v948, inf
        %v1115 = vsel %vm1114, %v948, %v1113
        %vm1116 = vcmp.eq.f32.partialorder %v948, 0.0
        %v1117 = vand.u32 %v948, 2147483648
        %v1118 = vsel %vm1116, %v1117, %v1115
        %v1119 = vrsqrt.pop %v949
        %v1120 = vmul.f32 %v949, %v1119
        %vm1121 = vcmp.eq.f32.partialorder %v949, inf
        %v1122 = vsel %vm1121, %v949, %v1120
        %vm1123 = vcmp.eq.f32.partialorder %v949, 0.0
        %v1124 = vand.u32 %v949, 2147483648
        %v1125 = vsel %vm1123, %v1124, %v1122
        %v1126 = vrsqrt.pop %v998
        %v1127 = vmul.f32 %v998, %v1126
        %vm1128 = vcmp.eq.f32.partialorder %v998, inf
        %v1129 = vsel %vm1128, %v998, %v1127
        %vm1130 = vcmp.eq.f32.partialorder %v998, 0.0
        %v1131 = vand.u32 %v998, 2147483648
        %v1132 = vsel %vm1130, %v1131, %v1129
        %v1133 = vrsqrt.pop %v999
        %v1134 = vmul.f32 %v999, %v1133
        %vm1135 = vcmp.eq.f32.partialorder %v999, inf
        %v1136 = vsel %vm1135, %v999, %v1134
        %vm1137 = vcmp.eq.f32.partialorder %v999, 0.0
        %v1138 = vand.u32 %v999, 2147483648
        %v1139 = vsel %vm1137, %v1138, %v1136
        %v1140 = vrsqrt.pop %v1000
        %v1141 = vmul.f32 %v1000, %v1140
        %vm1142 = vcmp.eq.f32.partialorder %v1000, inf
        %v1143 = vsel %vm1142, %v1000, %v1141
        %vm1144 = vcmp.eq.f32.partialorder %v1000, 0.0
        %v1145 = vand.u32 %v1000, 2147483648
        %v1146 = vsel %vm1144, %v1145, %v1143
        %v1147 = vrsqrt.pop %v1001
        %v1148 = vmul.f32 %v1001, %v1147
        %vm1149 = vcmp.eq.f32.partialorder %v1001, inf
        %v1150 = vsel %vm1149, %v1001, %v1148
        %vm1151 = vcmp.eq.f32.partialorder %v1001, 0.0
        %v1152 = vand.u32 %v1001, 2147483648
        %v1153 = vsel %vm1151, %v1152, %v1150
        %v1154 = vrsqrt.pop %v1002
        %v1155 = vmul.f32 %v1002, %v1154
        %vm1156 = vcmp.eq.f32.partialorder %v1002, inf
        %v1157 = vsel %vm1156, %v1002, %v1155
        %vm1158 = vcmp.eq.f32.partialorder %v1002, 0.0
        %v1159 = vand.u32 %v1002, 2147483648
        %v1160 = vsel %vm1158, %v1159, %v1157
        %v1161 = vrsqrt.pop %v1003
        %v1162 = vmul.f32 %v1003, %v1161
        %vm1163 = vcmp.eq.f32.partialorder %v1003, inf
        %v1164 = vsel %vm1163, %v1003, %v1162
        %vm1165 = vcmp.eq.f32.partialorder %v1003, 0.0
        %v1166 = vand.u32 %v1003, 2147483648
        %v1167 = vsel %vm1165, %v1166, %v1164
        %v1168 = vrsqrt.pop %v1004
        %v1169 = vmul.f32 %v1004, %v1168
        %vm1170 = vcmp.eq.f32.partialorder %v1004, inf
        %v1171 = vsel %vm1170, %v1004, %v1169
        %vm1172 = vcmp.eq.f32.partialorder %v1004, 0.0
        %v1173 = vand.u32 %v1004, 2147483648
        %v1174 = vsel %vm1172, %v1173, %v1171
        %v1175 = vrsqrt.pop %v1005
        %v1176 = vmul.f32 %v1005, %v1175
        %vm1177 = vcmp.eq.f32.partialorder %v1005, inf
        %v1178 = vsel %vm1177, %v1005, %v1176
        %vm1179 = vcmp.eq.f32.partialorder %v1005, 0.0
        %v1180 = vand.u32 %v1005, 2147483648
        %v1181 = vsel %vm1179, %v1180, %v1178
        %v1182 = vrsqrt.pop %v1006
        %v1183 = vmul.f32 %v1006, %v1182
        %vm1184 = vcmp.eq.f32.partialorder %v1006, inf
        %v1185 = vsel %vm1184, %v1006, %v1183
        %vm1186 = vcmp.eq.f32.partialorder %v1006, 0.0
        %v1187 = vand.u32 %v1006, 2147483648
        %v1188 = vsel %vm1186, %v1187, %v1185
        %v1189 = vrsqrt.pop %v1007
        %v1190 = vmul.f32 %v1007, %v1189
        %vm1191 = vcmp.eq.f32.partialorder %v1007, inf
        %v1192 = vsel %vm1191, %v1007, %v1190
        %vm1193 = vcmp.eq.f32.partialorder %v1007, 0.0
        %v1194 = vand.u32 %v1007, 2147483648
        %v1195 = vsel %vm1193, %v1194, %v1192
        %v1196 = vrsqrt.pop %v1008
        %v1197 = vmul.f32 %v1008, %v1196
        %vm1198 = vcmp.eq.f32.partialorder %v1008, inf
        %v1199 = vsel %vm1198, %v1008, %v1197
        %vm1200 = vcmp.eq.f32.partialorder %v1008, 0.0
        %v1201 = vand.u32 %v1008, 2147483648
        %v1202 = vsel %vm1200, %v1201, %v1199
        %v1203 = vrsqrt.pop %v1009
        %v1204 = vmul.f32 %v1009, %v1203
        %vm1205 = vcmp.eq.f32.partialorder %v1009, inf
        %v1206 = vsel %vm1205, %v1009, %v1204
        %vm1207 = vcmp.eq.f32.partialorder %v1009, 0.0
        %v1208 = vand.u32 %v1009, 2147483648
        %v1209 = vsel %vm1207, %v1208, %v1206
        %v1210 = vrsqrt.pop %v1010
        %v1211 = vmul.f32 %v1010, %v1210
        %vm1212 = vcmp.eq.f32.partialorder %v1010, inf
        %v1213 = vsel %vm1212, %v1010, %v1211
        %vm1214 = vcmp.eq.f32.partialorder %v1010, 0.0
        %v1215 = vand.u32 %v1010, 2147483648
        %v1216 = vsel %vm1214, %v1215, %v1213
        %v1217 = vrsqrt.pop %v1011
        %v1218 = vmul.f32 %v1011, %v1217
        %vm1219 = vcmp.eq.f32.partialorder %v1011, inf
        %v1220 = vsel %vm1219, %v1011, %v1218
        %vm1221 = vcmp.eq.f32.partialorder %v1011, 0.0
        %v1222 = vand.u32 %v1011, 2147483648
        %v1223 = vsel %vm1221, %v1222, %v1220
        %v1224 = vrsqrt.pop %v1012
        %v1225 = vmul.f32 %v1012, %v1224
        %vm1226 = vcmp.eq.f32.partialorder %v1012, inf
        %v1227 = vsel %vm1226, %v1012, %v1225
        %vm1228 = vcmp.eq.f32.partialorder %v1012, 0.0
        %v1229 = vand.u32 %v1012, 2147483648
        %v1230 = vsel %vm1228, %v1229, %v1227
        %v1231 = vrsqrt.pop %v1013
        %v1232 = vmul.f32 %v1013, %v1231
        %vm1233 = vcmp.eq.f32.partialorder %v1013, inf
        %v1234 = vsel %vm1233, %v1013, %v1232
        %vm1235 = vcmp.eq.f32.partialorder %v1013, 0.0
        %v1236 = vand.u32 %v1013, 2147483648
        %v1237 = vsel %vm1235, %v1236, %v1234
        %v1238 = vsub.f32 %v1132, %v1020
        %v1239 = vsub.f32 %v1139, %v1027
        %v1240 = vsub.f32 %v1146, %v1034
        %v1241 = vsub.f32 %v1153, %v1041
        %v1242 = vsub.f32 %v1160, %v1048
        %v1243 = vsub.f32 %v1167, %v1055
        %v1244 = vsub.f32 %v1174, %v1062
        %v1245 = vsub.f32 %v1181, %v1069
        %v1246 = vsub.f32 %v1188, %v1076
        %v1247 = vsub.f32 %v1195, %v1083
        %v1248 = vsub.f32 %v1202, %v1090
        %v1249 = vsub.f32 %v1209, %v1097
        %v1250 = vsub.f32 %v1216, %v1104
        %v1251 = vsub.f32 %v1223, %v1111
        %v1252 = vsub.f32 %v1230, %v1118
        %v1253 = vsub.f32 %v1237, %v1125
        %v1254 = vadd.f32 %v1132, 1.1920929e-07
        %v1255 = vadd.f32 %v1139, 1.1920929e-07
        %v1256 = vadd.f32 %v1146, 1.1920929e-07
        %v1257 = vadd.f32 %v1153, 1.1920929e-07
        %v1258 = vadd.f32 %v1160, 1.1920929e-07
        %v1259 = vadd.f32 %v1167, 1.1920929e-07
        %v1260 = vadd.f32 %v1174, 1.1920929e-07
        %v1261 = vadd.f32 %v1181, 1.1920929e-07
        %v1262 = vadd.f32 %v1188, 1.1920929e-07
        %v1263 = vadd.f32 %v1195, 1.1920929e-07
        %v1264 = vadd.f32 %v1202, 1.1920929e-07
        %v1265 = vadd.f32 %v1209, 1.1920929e-07
        %v1266 = vadd.f32 %v1216, 1.1920929e-07
        %v1267 = vadd.f32 %v1223, 1.1920929e-07
        %v1268 = vadd.f32 %v1230, 1.1920929e-07
        %v1269 = vadd.f32 %v1237, 1.1920929e-07
        %v1270 = vlog2.pop %v1254
        %v1271 = vmul.f32 %v1270, 0.6931472
        %v1272 = vlog2.pop %v1255
        %v1273 = vmul.f32 %v1272, 0.6931472
        %v1274 = vlog2.pop %v1256
        %v1275 = vmul.f32 %v1274, 0.6931472
        %v1276 = vlog2.pop %v1257
        %v1277 = vmul.f32 %v1276, 0.6931472
        %v1278 = vlog2.pop %v1258
        %v1279 = vmul.f32 %v1278, 0.6931472
        %v1280 = vlog2.pop %v1259
        %v1281 = vmul.f32 %v1280, 0.6931472
        %v1282 = vlog2.pop %v1260
        %v1283 = vmul.f32 %v1282, 0.6931472
        %v1284 = vlog2.pop %v1261
        %v1285 = vmul.f32 %v1284, 0.6931472
        %v1286 = vlog2.pop %v1262
        %v1287 = vmul.f32 %v1286, 0.6931472
        %v1288 = vlog2.pop %v1263
        %v1289 = vmul.f32 %v1288, 0.6931472
        %v1290 = vlog2.pop %v1264
        %v1291 = vmul.f32 %v1290, 0.6931472
        %v1292 = vlog2.pop %v1265
        %v1293 = vmul.f32 %v1292, 0.6931472
        %v1294 = vlog2.pop %v1266
        %v1295 = vmul.f32 %v1294, 0.6931472
        %v1296 = vlog2.pop %v1267
        %v1297 = vmul.f32 %v1296, 0.6931472
        %v1298 = vlog2.pop %v1268
        %v1299 = vmul.f32 %v1298, 0.6931472
        %v1300 = vlog2.pop %v1269
        %v1301 = vmul.f32 %v1300, 0.6931472
        %v1302 = vadd.f32 %v1020, 1.1920929e-07
        %v1303 = vadd.f32 %v1027, 1.1920929e-07
        %v1304 = vadd.f32 %v1034, 1.1920929e-07
        %v1305 = vadd.f32 %v1041, 1.1920929e-07
        %v1306 = vadd.f32 %v1048, 1.1920929e-07
        %v1307 = vadd.f32 %v1055, 1.1920929e-07
        %v1308 = vadd.f32 %v1062, 1.1920929e-07
        %v1309 = vadd.f32 %v1069, 1.1920929e-07
        %v1310 = vadd.f32 %v1076, 1.1920929e-07
        %v1311 = vadd.f32 %v1083, 1.1920929e-07
        %v1312 = vadd.f32 %v1090, 1.1920929e-07
        %v1313 = vadd.f32 %v1097, 1.1920929e-07
        %v1314 = vadd.f32 %v1104, 1.1920929e-07
        %v1315 = vadd.f32 %v1111, 1.1920929e-07
        %v1316 = vadd.f32 %v1118, 1.1920929e-07
        %v1317 = vadd.f32 %v1125, 1.1920929e-07
        %v1318 = vlog2.pop %v1302
        %v1319 = vmul.f32 %v1318, 0.6931472
        %v1320 = vlog2.pop %v1303
        %v1321 = vmul.f32 %v1320, 0.6931472
        %v1322 = vlog2.pop %v1304
        %v1323 = vmul.f32 %v1322, 0.6931472
        %v1324 = vlog2.pop %v1305
        %v1325 = vmul.f32 %v1324, 0.6931472
        %v1326 = vlog2.pop %v1306
        %v1327 = vmul.f32 %v1326, 0.6931472
        %v1328 = vlog2.pop %v1307
        %v1329 = vmul.f32 %v1328, 0.6931472
        %v1330 = vlog2.pop %v1308
        %v1331 = vmul.f32 %v1330, 0.6931472
        %v1332 = vlog2.pop %v1309
        %v1333 = vmul.f32 %v1332, 0.6931472
        %v1334 = vlog2.pop %v1310
        %v1335 = vmul.f32 %v1334, 0.6931472
        %v1336 = vlog2.pop %v1311
        %v1337 = vmul.f32 %v1336, 0.6931472
        %v1338 = vlog2.pop %v1312
        %v1339 = vmul.f32 %v1338, 0.6931472
        %v1340 = vlog2.pop %v1313
        %v1341 = vmul.f32 %v1340, 0.6931472
        %v1342 = vlog2.pop %v1314
        %v1343 = vmul.f32 %v1342, 0.6931472
        %v1344 = vlog2.pop %v1315
        %v1345 = vmul.f32 %v1344, 0.6931472
        %v1346 = vlog2.pop %v1316
        %v1347 = vmul.f32 %v1346, 0.6931472
        %v1348 = vlog2.pop %v1317
        %v1349 = vmul.f32 %v1348, 0.6931472
        %v1350 = vsub.f32 %v1271, %v1319
        %v1351 = vsub.f32 %v1273, %v1321
        %v1352 = vsub.f32 %v1275, %v1323
        %v1353 = vsub.f32 %v1277, %v1325
        %v1354 = vsub.f32 %v1279, %v1327
        %v1355 = vsub.f32 %v1281, %v1329
        %v1356 = vsub.f32 %v1283, %v1331
        %v1357 = vsub.f32 %v1285, %v1333
        %v1358 = vsub.f32 %v1287, %v1335
        %v1359 = vsub.f32 %v1289, %v1337
        %v1360 = vsub.f32 %v1291, %v1339
        %v1361 = vsub.f32 %v1293, %v1341
        %v1362 = vsub.f32 %v1295, %v1343
        %v1363 = vsub.f32 %v1297, %v1345
        %v1364 = vsub.f32 %v1299, %v1347
        %v1365 = vsub.f32 %v1301, %v1349
        %v1366 = vand.u32 2147483647, %v1350
        %v1367 = vand.u32 2147483647, %v1351
        %v1368 = vand.u32 2147483647, %v1352
        %v1369 = vand.u32 2147483647, %v1353
        %v1370 = vand.u32 2147483647, %v1354
        %v1371 = vand.u32 2147483647, %v1355
        %v1372 = vand.u32 2147483647, %v1356
        %v1373 = vand.u32 2147483647, %v1357
        %v1374 = vand.u32 2147483647, %v1358
        %v1375 = vand.u32 2147483647, %v1359
        %v1376 = vand.u32 2147483647, %v1360
        %v1377 = vand.u32 2147483647, %v1361
        %v1378 = vand.u32 2147483647, %v1362
        %v1379 = vand.u32 2147483647, %v1363
        %v1380 = vand.u32 2147483647, %v1364
        %v1381 = vand.u32 2147483647, %v1365
        %v1382 = vand.u32 2147483647, %v693
        %v1383 = vand.u32 2147483647, %v697
        %v1384 = vand.u32 2147483647, %v703
        %v1385 = vand.u32 2147483647, %v707
        %v1386 = vand.u32 2147483647, %v713
        %v1387 = vand.u32 2147483647, %v717
        %v1388 = vand.u32 2147483647, %v723
        %v1389 = vand.u32 2147483647, %v727
        %v1390 = vand.u32 2147483647, %v733
        %v1391 = vand.u32 2147483647, %v737
        %v1392 = vand.u32 2147483647, %v743
        %v1393 = vand.u32 2147483647, %v747
        %v1394 = vand.u32 2147483647, %v753
        %v1395 = vand.u32 2147483647, %v757
        %v1396 = vand.u32 2147483647, %v763
        %v1397 = vand.u32 2147483647, %v767
        %v1398 = vmax.f32 %v1382, 0.00031622776
        %v1399 = vmax.f32 %v1383, 0.00031622776
        %v1400 = vmax.f32 %v1384, 0.00031622776
        %v1401 = vmax.f32 %v1385, 0.00031622776
        %v1402 = vmax.f32 %v1386, 0.00031622776
        %v1403 = vmax.f32 %v1387, 0.00031622776
        %v1404 = vmax.f32 %v1388, 0.00031622776
        %v1405 = vmax.f32 %v1389, 0.00031622776
        %v1406 = vmax.f32 %v1390, 0.00031622776
        %v1407 = vmax.f32 %v1391, 0.00031622776
        %v1408 = vmax.f32 %v1392, 0.00031622776
        %v1409 = vmax.f32 %v1393, 0.00031622776
        %v1410 = vmax.f32 %v1394, 0.00031622776
        %v1411 = vmax.f32 %v1395, 0.00031622776
        %v1412 = vmax.f32 %v1396, 0.00031622776
        %v1413 = vmax.f32 %v1397, 0.00031622776
        %v1414 = vand.u32 2147483647, %v773
        %v1415 = vand.u32 2147483647, %v777
        %v1416 = vand.u32 2147483647, %v783
        %v1417 = vand.u32 2147483647, %v787
        %v1418 = vand.u32 2147483647, %v793
        %v1419 = vand.u32 2147483647, %v797
        %v1420 = vand.u32 2147483647, %v803
        %v1421 = vand.u32 2147483647, %v807
        %v1422 = vand.u32 2147483647, %v813
        %v1423 = vand.u32 2147483647, %v817
        %v1424 = vand.u32 2147483647, %v823
        %v1425 = vand.u32 2147483647, %v827
        %v1426 = vand.u32 2147483647, %v833
        %v1427 = vand.u32 2147483647, %v837
        %v1428 = vand.u32 2147483647, %v843
        %v1429 = vand.u32 2147483647, %v847
        %v1430 = vmax.f32 %v1414, 0.00031622776
        %v1431 = vmax.f32 %v1415, 0.00031622776
        %v1432 = vmax.f32 %v1416, 0.00031622776
        %v1433 = vmax.f32 %v1417, 0.00031622776
        %v1434 = vmax.f32 %v1418, 0.00031622776
        %v1435 = vmax.f32 %v1419, 0.00031622776
        %v1436 = vmax.f32 %v1420, 0.00031622776
        %v1437 = vmax.f32 %v1421, 0.00031622776
        %v1438 = vmax.f32 %v1422, 0.00031622776
        %v1439 = vmax.f32 %v1423, 0.00031622776
        %v1440 = vmax.f32 %v1424, 0.00031622776
        %v1441 = vmax.f32 %v1425, 0.00031622776
        %v1442 = vmax.f32 %v1426, 0.00031622776
        %v1443 = vmax.f32 %v1427, 0.00031622776
        %v1444 = vmax.f32 %v1428, 0.00031622776
        %v1445 = vmax.f32 %v1429, 0.00031622776
        %v1446 = vsub.f32 %v1430, %v1398
        %v1447 = vsub.f32 %v1431, %v1399
        %v1448 = vsub.f32 %v1432, %v1400
        %v1449 = vsub.f32 %v1433, %v1401
        %v1450 = vsub.f32 %v1434, %v1402
        %v1451 = vsub.f32 %v1435, %v1403
        %v1452 = vsub.f32 %v1436, %v1404
        %v1453 = vsub.f32 %v1437, %v1405
        %v1454 = vsub.f32 %v1438, %v1406
        %v1455 = vsub.f32 %v1439, %v1407
        %v1456 = vsub.f32 %v1440, %v1408
        %v1457 = vsub.f32 %v1441, %v1409
        %v1458 = vsub.f32 %v1442, %v1410
        %v1459 = vsub.f32 %v1443, %v1411
        %v1460 = vsub.f32 %v1444, %v1412
        %v1461 = vsub.f32 %v1445, %v1413
        %v1462 = vadd.f32 %v1430, 1.1920929e-07
        %v1463 = vadd.f32 %v1431, 1.1920929e-07
        %v1464 = vadd.f32 %v1432, 1.1920929e-07
        %v1465 = vadd.f32 %v1433, 1.1920929e-07
        %v1466 = vadd.f32 %v1434, 1.1920929e-07
        %v1467 = vadd.f32 %v1435, 1.1920929e-07
        %v1468 = vadd.f32 %v1436, 1.1920929e-07
        %v1469 = vadd.f32 %v1437, 1.1920929e-07
        %v1470 = vadd.f32 %v1438, 1.1920929e-07
        %v1471 = vadd.f32 %v1439, 1.1920929e-07
        %v1472 = vadd.f32 %v1440, 1.1920929e-07
        %v1473 = vadd.f32 %v1441, 1.1920929e-07
        %v1474 = vadd.f32 %v1442, 1.1920929e-07
        %v1475 = vadd.f32 %v1443, 1.1920929e-07
        %v1476 = vadd.f32 %v1444, 1.1920929e-07
        %v1477 = vadd.f32 %v1445, 1.1920929e-07
        %v1478 = vlog2.pop %v1462
        %v1479 = vmul.f32 %v1478, 0.6931472
        %v1480 = vlog2.pop %v1463
        %v1481 = vmul.f32 %v1480, 0.6931472
        %v1482 = vlog2.pop %v1464
        %v1483 = vmul.f32 %v1482, 0.6931472
        %v1484 = vlog2.pop %v1465
        %v1485 = vmul.f32 %v1484, 0.6931472
        %v1486 = vlog2.pop %v1466
        %v1487 = vmul.f32 %v1486, 0.6931472
        %v1488 = vlog2.pop %v1467
        %v1489 = vmul.f32 %v1488, 0.6931472
        %v1490 = vlog2.pop %v1468
        %v1491 = vmul.f32 %v1490, 0.6931472
        %v1492 = vlog2.pop %v1469
        %v1493 = vmul.f32 %v1492, 0.6931472
        %v1494 = vlog2.pop %v1470
        %v1495 = vmul.f32 %v1494, 0.6931472
        %v1496 = vlog2.pop %v1471
        %v1497 = vmul.f32 %v1496, 0.6931472
        %v1498 = vlog2.pop %v1472
        %v1499 = vmul.f32 %v1498, 0.6931472
        %v1500 = vlog2.pop %v1473
        %v1501 = vmul.f32 %v1500, 0.6931472
        %v1502 = vlog2.pop %v1474
        %v1503 = vmul.f32 %v1502, 0.6931472
        %v1504 = vlog2.pop %v1475
        %v1505 = vmul.f32 %v1504, 0.6931472
        %v1506 = vlog2.pop %v1476
        %v1507 = vmul.f32 %v1506, 0.6931472
        %v1508 = vlog2.pop %v1477
        %v1509 = vmul.f32 %v1508, 0.6931472
        %v1510 = vadd.f32 %v1398, 1.1920929e-07
        %v1511 = vadd.f32 %v1399, 1.1920929e-07
        %v1512 = vadd.f32 %v1400, 1.1920929e-07
        %v1513 = vadd.f32 %v1401, 1.1920929e-07
        %v1514 = vadd.f32 %v1402, 1.1920929e-07
        %v1515 = vadd.f32 %v1403, 1.1920929e-07
        %v1516 = vadd.f32 %v1404, 1.1920929e-07
        %v1517 = vadd.f32 %v1405, 1.1920929e-07
        %v1518 = vadd.f32 %v1406, 1.1920929e-07
        %v1519 = vadd.f32 %v1407, 1.1920929e-07
        %v1520 = vadd.f32 %v1408, 1.1920929e-07
        %v1521 = vadd.f32 %v1409, 1.1920929e-07
        %v1522 = vadd.f32 %v1410, 1.1920929e-07
        %v1523 = vadd.f32 %v1411, 1.1920929e-07
        %v1524 = vadd.f32 %v1412, 1.1920929e-07
        %v1525 = vadd.f32 %v1413, 1.1920929e-07
        %v1526 = vlog2.pop %v1510
        %v1527 = vmul.f32 %v1526, 0.6931472
        %v1528 = vlog2.pop %v1511
        %v1529 = vmul.f32 %v1528, 0.6931472
        %v1530 = vlog2.pop %v1512
        %v1531 = vmul.f32 %v1530, 0.6931472
        %v1532 = vlog2.pop %v1513
        %v1533 = vmul.f32 %v1532, 0.6931472
        %v1534 = vlog2.pop %v1514
        %v1535 = vmul.f32 %v1534, 0.6931472
        %v1536 = vlog2.pop %v1515
        %v1537 = vmul.f32 %v1536, 0.6931472
        %v1538 = vlog2.pop %v1516
        %v1539 = vmul.f32 %v1538, 0.6931472
        %v1540 = vlog2.pop %v1517
        %v1541 = vmul.f32 %v1540, 0.6931472
        %v1542 = vlog2.pop %v1518
        %v1543 = vmul.f32 %v1542, 0.6931472
        %v1544 = vlog2.pop %v1519
        %v1545 = vmul.f32 %v1544, 0.6931472
        %v1546 = vlog2.pop %v1520
        %v1547 = vmul.f32 %v1546, 0.6931472
        %v1548 = vlog2.pop %v1521
        %v1549 = vmul.f32 %v1548, 0.6931472
        %v1550 = vlog2.pop %v1522
        %v1551 = vmul.f32 %v1550, 0.6931472
        %v1552 = vlog2.pop %v1523
        %v1553 = vmul.f32 %v1552, 0.6931472
        %v1554 = vlog2.pop %v1524
        %v1555 = vmul.f32 %v1554, 0.6931472
        %v1556 = vlog2.pop %v1525
        %v1557 = vmul.f32 %v1556, 0.6931472
        %v1558 = vsub.f32 %v1479, %v1527
        %v1559 = vsub.f32 %v1481, %v1529
        %v1560 = vsub.f32 %v1483, %v1531
        %v1561 = vsub.f32 %v1485, %v1533
        %v1562 = vsub.f32 %v1487, %v1535
        %v1563 = vsub.f32 %v1489, %v1537
        %v1564 = vsub.f32 %v1491, %v1539
        %v1565 = vsub.f32 %v1493, %v1541
        %v1566 = vsub.f32 %v1495, %v1543
        %v1567 = vsub.f32 %v1497, %v1545
        %v1568 = vsub.f32 %v1499, %v1547
        %v1569 = vsub.f32 %v1501, %v1549
        %v1570 = vsub.f32 %v1503, %v1551
        %v1571 = vsub.f32 %v1505, %v1553
        %v1572 = vsub.f32 %v1507, %v1555
        %v1573 = vsub.f32 %v1509, %v1557
        %v1574 = vand.u32 2147483647, %v1558
        %v1575 = vand.u32 2147483647, %v1559
        %v1576 = vand.u32 2147483647, %v1560
        %v1577 = vand.u32 2147483647, %v1561
        %v1578 = vand.u32 2147483647, %v1562
        %v1579 = vand.u32 2147483647, %v1563
        %v1580 = vand.u32 2147483647, %v1564
        %v1581 = vand.u32 2147483647, %v1565
        %v1582 = vand.u32 2147483647, %v1566
        %v1583 = vand.u32 2147483647, %v1567
        %v1584 = vand.u32 2147483647, %v1568
        %v1585 = vand.u32 2147483647, %v1569
        %v1586 = vand.u32 2147483647, %v1570
        %v1587 = vand.u32 2147483647, %v1571
        %v1588 = vand.u32 2147483647, %v1572
        %v1589 = vand.u32 2147483647, %v1573
        %v1590 = vmul.f32 %v773, %v773
        %v1591 = vmul.f32 %v777, %v777
        %v1592 = vmul.f32 %v783, %v783
        %v1593 = vmul.f32 %v787, %v787
        %v1594 = vmul.f32 %v793, %v793
        %v1595 = vmul.f32 %v797, %v797
        %v1596 = vmul.f32 %v803, %v803
        %v1597 = vmul.f32 %v807, %v807
        %v1598 = vmul.f32 %v813, %v813
        %v1599 = vmul.f32 %v817, %v817
        %v1600 = vmul.f32 %v823, %v823
        %v1601 = vmul.f32 %v827, %v827
        %v1602 = vmul.f32 %v833, %v833
        %v1603 = vmul.f32 %v837, %v837
        %v1604 = vmul.f32 %v843, %v843
        %v1605 = vmul.f32 %v847, %v847
        %v1606 = vmax.f32 %v1590, 1e-07
        %v1607 = vmax.f32 %v1591, 1e-07
        %v1608 = vmax.f32 %v1592, 1e-07
        %v1609 = vmax.f32 %v1593, 1e-07
        %v1610 = vmax.f32 %v1594, 1e-07
        %v1611 = vmax.f32 %v1595, 1e-07
        %v1612 = vmax.f32 %v1596, 1e-07
        %v1613 = vmax.f32 %v1597, 1e-07
        %v1614 = vmax.f32 %v1598, 1e-07
        %v1615 = vmax.f32 %v1599, 1e-07
        %v1616 = vmax.f32 %v1600, 1e-07
        %v1617 = vmax.f32 %v1601, 1e-07
        %v1618 = vmax.f32 %v1602, 1e-07
        %v1619 = vmax.f32 %v1603, 1e-07
        %v1620 = vmax.f32 %v1604, 1e-07
        %v1621 = vmax.f32 %v1605, 1e-07
        %s1622 = sadd.s32 %s24, %s25
        %s1623 = smul.u32 %s1622, 128
        %v1624 = vlaneseq
        %v1625 = vshrl.u32 %v1624, 7
        %v1626 = vadd.s32 %v1625, 8
        %v1627 = vadd.s32 %v1625, 16
        %v1628 = vadd.s32 %v1625, 24
        %v1629 = vadd.s32 %v1625, 32
        %v1630 = vadd.s32 %v1625, 40
        %v1631 = vadd.s32 %v1625, 48
        %v1632 = vadd.s32 %v1625, 56
        %v1633 = vadd.s32 %v1625, 64
        %v1634 = vadd.s32 %v1625, 72
        %v1635 = vadd.s32 %v1625, 80
        %v1636 = vadd.s32 %v1625, 88
        %v1637 = vadd.s32 %v1625, 96
        %v1638 = vadd.s32 %v1625, 104
        %v1639 = vadd.s32 %v1625, 112
        %v1640 = vadd.s32 %v1625, 120
        %v1641 = vstv %s1623
        %v1642 = vadd.s32 %v1641, %v1625
        %v1643 = vadd.s32 %v1641, %v1626
        %v1644 = vadd.s32 %v1641, %v1627
        %v1645 = vadd.s32 %v1641, %v1628
        %v1646 = vadd.s32 %v1641, %v1629
        %v1647 = vadd.s32 %v1641, %v1630
        %v1648 = vadd.s32 %v1641, %v1631
        %v1649 = vadd.s32 %v1641, %v1632
        %v1650 = vadd.s32 %v1641, %v1633
        %v1651 = vadd.s32 %v1641, %v1634
        %v1652 = vadd.s32 %v1641, %v1635
        %v1653 = vadd.s32 %v1641, %v1636
        %v1654 = vadd.s32 %v1641, %v1637
        %v1655 = vadd.s32 %v1641, %v1638
        %v1656 = vadd.s32 %v1641, %v1639
        %v1657 = vadd.s32 %v1641, %v1640
        %vm1658 = vcmp.lt.s32.totalorder %v1642, 68
        %vm1659 = vcmp.lt.s32.totalorder %v1643, 68
        %vm1660 = vcmp.lt.s32.totalorder %v1644, 68
        %vm1661 = vcmp.lt.s32.totalorder %v1645, 68
        %vm1662 = vcmp.lt.s32.totalorder %v1646, 68
        %vm1663 = vcmp.lt.s32.totalorder %v1647, 68
        %vm1664 = vcmp.lt.s32.totalorder %v1648, 68
        %vm1665 = vcmp.lt.s32.totalorder %v1649, 68
        %vm1666 = vcmp.lt.s32.totalorder %v1650, 68
        %vm1667 = vcmp.lt.s32.totalorder %v1651, 68
        %vm1668 = vcmp.lt.s32.totalorder %v1652, 68
        %vm1669 = vcmp.lt.s32.totalorder %v1653, 68
        %vm1670 = vcmp.lt.s32.totalorder %v1654, 68
        %vm1671 = vcmp.lt.s32.totalorder %v1655, 68
        %vm1672 = vcmp.lt.s32.totalorder %v1656, 68
        %vm1673 = vcmp.lt.s32.totalorder %v1657, 68
        %v1674 = vld [vmem:[#allocation2] sm:$0xff]
        %v1675 = vld [vmem:[#allocation2 + $0x8] sm:$0xff]
        %v1676 = vld [vmem:[#allocation2 + $0x10] sm:$0xff]
        %v1677 = vld [vmem:[#allocation2 + $0x18] sm:$0xff]
        %v1678 = vld [vmem:[#allocation2 + $0x20] sm:$0xff]
        %v1679 = vld [vmem:[#allocation2 + $0x28] sm:$0xff]
        %v1680 = vld [vmem:[#allocation2 + $0x30] sm:$0xff]
        %v1681 = vld [vmem:[#allocation2 + $0x38] sm:$0xff]
        %v1682 = vld [vmem:[#allocation2 + $0x40] sm:$0xff]
        %v1683 = vld [vmem:[#allocation2 + $0x48] sm:$0xff]
        %v1684 = vld [vmem:[#allocation2 + $0x50] sm:$0xff]
        %v1685 = vld [vmem:[#allocation2 + $0x58] sm:$0xff]
        %v1686 = vld [vmem:[#allocation2 + $0x60] sm:$0xff]
        %v1687 = vld [vmem:[#allocation2 + $0x68] sm:$0xff]
        %v1688 = vld [vmem:[#allocation2 + $0x70] sm:$0xff]
        %v1689 = vld [vmem:[#allocation2 + $0x78] sm:$0xff]
        %v1690 = vmul.f32 %v1238, %v1238
        %v1691 = vmul.f32 %v1239, %v1239
        %v1692 = vmul.f32 %v1240, %v1240
        %v1693 = vmul.f32 %v1241, %v1241
        %v1694 = vmul.f32 %v1242, %v1242
        %v1695 = vmul.f32 %v1243, %v1243
        %v1696 = vmul.f32 %v1244, %v1244
        %v1697 = vmul.f32 %v1245, %v1245
        %v1698 = vmul.f32 %v1246, %v1246
        %v1699 = vmul.f32 %v1247, %v1247
        %v1700 = vmul.f32 %v1248, %v1248
        %v1701 = vmul.f32 %v1249, %v1249
        %v1702 = vmul.f32 %v1250, %v1250
        %v1703 = vmul.f32 %v1251, %v1251
        %v1704 = vmul.f32 %v1252, %v1252
        %v1705 = vmul.f32 %v1253, %v1253
        %v1706 = vmul.f32 %v1446, %v1446
        %v1707 = vmul.f32 %v1447, %v1447
        %v1708 = vmul.f32 %v1448, %v1448
        %v1709 = vmul.f32 %v1449, %v1449
        %v1710 = vmul.f32 %v1450, %v1450
        %v1711 = vmul.f32 %v1451, %v1451
        %v1712 = vmul.f32 %v1452, %v1452
        %v1713 = vmul.f32 %v1453, %v1453
        %v1714 = vmul.f32 %v1454, %v1454
        %v1715 = vmul.f32 %v1455, %v1455
        %v1716 = vmul.f32 %v1456, %v1456
        %v1717 = vmul.f32 %v1457, %v1457
        %v1718 = vmul.f32 %v1458, %v1458
        %v1719 = vmul.f32 %v1459, %v1459
        %v1720 = vmul.f32 %v1460, %v1460
        %v1721 = vmul.f32 %v1461, %v1461
        %1723 = vset.pattern.permute.xlu0 0
        %1724 = vperm.xlu0 %1723, %v1706
        %v1725 = vpop.permute.xlu0 %1724
        %1728 = vset.pattern.permute.xlu0 0
        %1729 = vperm.xlu0 %1728, %v1707
        %v1730 = vpop.permute.xlu0 %1729
        %1733 = vset.pattern.permute.xlu0 0
        %1734 = vperm.xlu0 %1733, %v1708
        %v1735 = vpop.permute.xlu0 %1734
        %1738 = vset.pattern.permute.xlu0 0
        %1739 = vperm.xlu0 %1738, %v1709
        %v1740 = vpop.permute.xlu0 %1739
        %1743 = vset.pattern.permute.xlu0 0
        %1744 = vperm.xlu0 %1743, %v1710
        %v1745 = vpop.permute.xlu0 %1744
        %1748 = vset.pattern.permute.xlu0 0
        %1749 = vperm.xlu0 %1748, %v1711
        %v1750 = vpop.permute.xlu0 %1749
        %1753 = vset.pattern.permute.xlu0 0
        %1754 = vperm.xlu0 %1753, %v1712
        %v1755 = vpop.permute.xlu0 %1754
        %1758 = vset.pattern.permute.xlu0 0
        %1759 = vperm.xlu0 %1758, %v1713
        %v1760 = vpop.permute.xlu0 %1759
        %1763 = vset.pattern.permute.xlu0 0
        %1764 = vperm.xlu0 %1763, %v1714
        %v1765 = vpop.permute.xlu0 %1764
        %1768 = vset.pattern.permute.xlu0 0
        %1769 = vperm.xlu0 %1768, %v1715
        %v1770 = vpop.permute.xlu0 %1769
        %1773 = vset.pattern.permute.xlu0 0
        %1774 = vperm.xlu0 %1773, %v1716
        %v1775 = vpop.permute.xlu0 %1774
        %1778 = vset.pattern.permute.xlu0 0
        %1779 = vperm.xlu0 %1778, %v1717
        %v1780 = vpop.permute.xlu0 %1779
        %1783 = vset.pattern.permute.xlu0 0
        %1784 = vperm.xlu0 %1783, %v1718
        %v1785 = vpop.permute.xlu0 %1784
        %1788 = vset.pattern.permute.xlu0 0
        %1789 = vperm.xlu0 %1788, %v1719
        %v1790 = vpop.permute.xlu0 %1789
        %1793 = vset.pattern.permute.xlu0 0
        %1794 = vperm.xlu0 %1793, %v1720
        %v1795 = vpop.permute.xlu0 %1794
        %1798 = vset.pattern.permute.xlu0 0
        %1799 = vperm.xlu0 %1798, %v1721
        %v1800 = vpop.permute.xlu0 %1799
        %v1802 = vsel %vm853, %v1725, 0.0
        %v1803 = vsel %vm853, %v1730, 0.0
        %v1804 = vsel %vm853, %v1735, 0.0
        %v1805 = vsel %vm853, %v1740, 0.0
        %v1806 = vsel %vm853, %v1745, 0.0
        %v1807 = vsel %vm853, %v1750, 0.0
        %v1808 = vsel %vm853, %v1755, 0.0
        %v1809 = vsel %vm853, %v1760, 0.0
        %v1810 = vsel %vm853, %v1765, 0.0
        %v1811 = vsel %vm853, %v1770, 0.0
        %v1812 = vsel %vm853, %v1775, 0.0
        %v1813 = vsel %vm853, %v1780, 0.0
        %v1814 = vsel %vm853, %v1785, 0.0
        %v1815 = vsel %vm853, %v1790, 0.0
        %v1816 = vsel %vm853, %v1795, 0.0
        %v1817 = vsel %vm853, %v1800, 0.0
        %v1818 = vadd.f32 %v1690, %v1802
        %v1819 = vadd.f32 %v1691, %v1803
        %v1820 = vadd.f32 %v1692, %v1804
        %v1821 = vadd.f32 %v1693, %v1805
        %v1822 = vadd.f32 %v1694, %v1806
        %v1823 = vadd.f32 %v1695, %v1807
        %v1824 = vadd.f32 %v1696, %v1808
        %v1825 = vadd.f32 %v1697, %v1809
        %v1826 = vadd.f32 %v1698, %v1810
        %v1827 = vadd.f32 %v1699, %v1811
        %v1828 = vadd.f32 %v1700, %v1812
        %v1829 = vadd.f32 %v1701, %v1813
        %v1830 = vadd.f32 %v1702, %v1814
        %v1831 = vadd.f32 %v1703, %v1815
        %v1832 = vadd.f32 %v1704, %v1816
        %v1833 = vadd.f32 %v1705, %v1817
        %v1834 = vadd.f32 %v1674, %v1818
        %v1835 = vadd.f32 %v1675, %v1819
        %v1836 = vadd.f32 %v1676, %v1820
        %v1837 = vadd.f32 %v1677, %v1821
        %v1838 = vadd.f32 %v1678, %v1822
        %v1839 = vadd.f32 %v1679, %v1823
        %v1840 = vadd.f32 %v1680, %v1824
        %v1841 = vadd.f32 %v1681, %v1825
        %v1842 = vadd.f32 %v1682, %v1826
        %v1843 = vadd.f32 %v1683, %v1827
        %v1844 = vadd.f32 %v1684, %v1828
        %v1845 = vadd.f32 %v1685, %v1829
        %v1846 = vadd.f32 %v1686, %v1830
        %v1847 = vadd.f32 %v1687, %v1831
        %v1848 = vadd.f32 %v1688, %v1832
        %v1849 = vadd.f32 %v1689, %v1833
        %1850 = vst [vmem:[#allocation2] sm:$0xff] %v1834
        %1851 = vst [vmem:[#allocation2 + $0x8] sm:$0xff] %v1835
        %1852 = vst [vmem:[#allocation2 + $0x10] sm:$0xff] %v1836
        %1853 = vst [vmem:[#allocation2 + $0x18] sm:$0xff] %v1837
        %1854 = vst [vmem:[#allocation2 + $0x20] sm:$0xff] %v1838
        %1855 = vst [vmem:[#allocation2 + $0x28] sm:$0xff] %v1839
        %1856 = vst [vmem:[#allocation2 + $0x30] sm:$0xff] %v1840
        %1857 = vst [vmem:[#allocation2 + $0x38] sm:$0xff] %v1841
        %1858 = vst [vmem:[#allocation2 + $0x40] sm:$0xff] %v1842
        %1859 = vst [vmem:[#allocation2 + $0x48] sm:$0xff] %v1843
        %1860 = vst [vmem:[#allocation2 + $0x50] sm:$0xff] %v1844
        %1861 = vst [vmem:[#allocation2 + $0x58] sm:$0xff] %v1845
        %1862 = vst [vmem:[#allocation2 + $0x60] sm:$0xff] %v1846
        %1863 = vst [vmem:[#allocation2 + $0x68] sm:$0xff] %v1847
        %1864 = vst [vmem:[#allocation2 + $0x70] sm:$0xff] %v1848
        %1865 = vst [vmem:[#allocation2 + $0x78] sm:$0xff] %v1849
        %v1866 = vld [vmem:[#allocation4] sm:$0xff]
        %v1867 = vld [vmem:[#allocation4 + $0x8] sm:$0xff]
        %v1868 = vld [vmem:[#allocation4 + $0x10] sm:$0xff]
        %v1869 = vld [vmem:[#allocation4 + $0x18] sm:$0xff]
        %v1870 = vld [vmem:[#allocation4 + $0x20] sm:$0xff]
        %v1871 = vld [vmem:[#allocation4 + $0x28] sm:$0xff]
        %v1872 = vld [vmem:[#allocation4 + $0x30] sm:$0xff]
        %v1873 = vld [vmem:[#allocation4 + $0x38] sm:$0xff]
        %v1874 = vld [vmem:[#allocation4 + $0x40] sm:$0xff]
        %v1875 = vld [vmem:[#allocation4 + $0x48] sm:$0xff]
        %v1876 = vld [vmem:[#allocation4 + $0x50] sm:$0xff]
        %v1877 = vld [vmem:[#allocation4 + $0x58] sm:$0xff]
        %v1878 = vld [vmem:[#allocation4 + $0x60] sm:$0xff]
        %v1879 = vld [vmem:[#allocation4 + $0x68] sm:$0xff]
        %v1880 = vld [vmem:[#allocation4 + $0x70] sm:$0xff]
        %v1881 = vld [vmem:[#allocation4 + $0x78] sm:$0xff]
        %1883 = vset.pattern.permute.xlu0 0
        %1884 = vperm.xlu0 %1883, %v1574
        %v1885 = vpop.permute.xlu0 %1884
        %1888 = vset.pattern.permute.xlu0 0
        %1889 = vperm.xlu0 %1888, %v1575
        %v1890 = vpop.permute.xlu0 %1889
        %1893 = vset.pattern.permute.xlu0 0
        %1894 = vperm.xlu0 %1893, %v1576
        %v1895 = vpop.permute.xlu0 %1894
        %1898 = vset.pattern.permute.xlu0 0
        %1899 = vperm.xlu0 %1898, %v1577
        %v1900 = vpop.permute.xlu0 %1899
        %1903 = vset.pattern.permute.xlu0 0
        %1904 = vperm.xlu0 %1903, %v1578
        %v1905 = vpop.permute.xlu0 %1904
        %1908 = vset.pattern.permute.xlu0 0
        %1909 = vperm.xlu0 %1908, %v1579
        %v1910 = vpop.permute.xlu0 %1909
        %1913 = vset.pattern.permute.xlu0 0
        %1914 = vperm.xlu0 %1913, %v1580
        %v1915 = vpop.permute.xlu0 %1914
        %1918 = vset.pattern.permute.xlu0 0
        %1919 = vperm.xlu0 %1918, %v1581
        %v1920 = vpop.permute.xlu0 %1919
        %1923 = vset.pattern.permute.xlu0 0
        %1924 = vperm.xlu0 %1923, %v1582
        %v1925 = vpop.permute.xlu0 %1924
        %1928 = vset.pattern.permute.xlu0 0
        %1929 = vperm.xlu0 %1928, %v1583
        %v1930 = vpop.permute.xlu0 %1929
        %1933 = vset.pattern.permute.xlu0 0
        %1934 = vperm.xlu0 %1933, %v1584
        %v1935 = vpop.permute.xlu0 %1934
        %1938 = vset.pattern.permute.xlu0 0
        %1939 = vperm.xlu0 %1938, %v1585
        %v1940 = vpop.permute.xlu0 %1939
        %1943 = vset.pattern.permute.xlu0 0
        %1944 = vperm.xlu0 %1943, %v1586
        %v1945 = vpop.permute.xlu0 %1944
        %1948 = vset.pattern.permute.xlu0 0
        %1949 = vperm.xlu0 %1948, %v1587
        %v1950 = vpop.permute.xlu0 %1949
        %1953 = vset.pattern.permute.xlu0 0
        %1954 = vperm.xlu0 %1953, %v1588
        %v1955 = vpop.permute.xlu0 %1954
        %1958 = vset.pattern.permute.xlu0 0
        %1959 = vperm.xlu0 %1958, %v1589
        %v1960 = vpop.permute.xlu0 %1959
        %v1962 = vsel %vm853, %v1885, 0.0
        %v1963 = vsel %vm853, %v1890, 0.0
        %v1964 = vsel %vm853, %v1895, 0.0
        %v1965 = vsel %vm853, %v1900, 0.0
        %v1966 = vsel %vm853, %v1905, 0.0
        %v1967 = vsel %vm853, %v1910, 0.0
        %v1968 = vsel %vm853, %v1915, 0.0
        %v1969 = vsel %vm853, %v1920, 0.0
        %v1970 = vsel %vm853, %v1925, 0.0
        %v1971 = vsel %vm853, %v1930, 0.0
        %v1972 = vsel %vm853, %v1935, 0.0
        %v1973 = vsel %vm853, %v1940, 0.0
        %v1974 = vsel %vm853, %v1945, 0.0
        %v1975 = vsel %vm853, %v1950, 0.0
        %v1976 = vsel %vm853, %v1955, 0.0
        %v1977 = vsel %vm853, %v1960, 0.0
        %v1978 = vadd.f32 %v1366, %v1962
        %v1979 = vadd.f32 %v1367, %v1963
        %v1980 = vadd.f32 %v1368, %v1964
        %v1981 = vadd.f32 %v1369, %v1965
        %v1982 = vadd.f32 %v1370, %v1966
        %v1983 = vadd.f32 %v1371, %v1967
        %v1984 = vadd.f32 %v1372, %v1968
        %v1985 = vadd.f32 %v1373, %v1969
        %v1986 = vadd.f32 %v1374, %v1970
        %v1987 = vadd.f32 %v1375, %v1971
        %v1988 = vadd.f32 %v1376, %v1972
        %v1989 = vadd.f32 %v1377, %v1973
        %v1990 = vadd.f32 %v1378, %v1974
        %v1991 = vadd.f32 %v1379, %v1975
        %v1992 = vadd.f32 %v1380, %v1976
        %v1993 = vadd.f32 %v1381, %v1977
        %v1994 = vadd.f32 %v1866, %v1978
        %v1995 = vadd.f32 %v1867, %v1979
        %v1996 = vadd.f32 %v1868, %v1980
        %v1997 = vadd.f32 %v1869, %v1981
        %v1998 = vadd.f32 %v1870, %v1982
        %v1999 = vadd.f32 %v1871, %v1983
        %v2000 = vadd.f32 %v1872, %v1984
        %v2001 = vadd.f32 %v1873, %v1985
        %v2002 = vadd.f32 %v1874, %v1986
        %v2003 = vadd.f32 %v1875, %v1987
        %v2004 = vadd.f32 %v1876, %v1988
        %v2005 = vadd.f32 %v1877, %v1989
        %v2006 = vadd.f32 %v1878, %v1990
        %v2007 = vadd.f32 %v1879, %v1991
        %v2008 = vadd.f32 %v1880, %v1992
        %v2009 = vadd.f32 %v1881, %v1993
        %2010 = vst [vmem:[#allocation4] sm:$0xff] %v1994
        %2011 = vst [vmem:[#allocation4 + $0x8] sm:$0xff] %v1995
        %2012 = vst [vmem:[#allocation4 + $0x10] sm:$0xff] %v1996
        %2013 = vst [vmem:[#allocation4 + $0x18] sm:$0xff] %v1997
        %2014 = vst [vmem:[#allocation4 + $0x20] sm:$0xff] %v1998
        %2015 = vst [vmem:[#allocation4 + $0x28] sm:$0xff] %v1999
        %2016 = vst [vmem:[#allocation4 + $0x30] sm:$0xff] %v2000
        %2017 = vst [vmem:[#allocation4 + $0x38] sm:$0xff] %v2001
        %2018 = vst [vmem:[#allocation4 + $0x40] sm:$0xff] %v2002
        %2019 = vst [vmem:[#allocation4 + $0x48] sm:$0xff] %v2003
        %2020 = vst [vmem:[#allocation4 + $0x50] sm:$0xff] %v2004
        %2021 = vst [vmem:[#allocation4 + $0x58] sm:$0xff] %v2005
        %2022 = vst [vmem:[#allocation4 + $0x60] sm:$0xff] %v2006
        %2023 = vst [vmem:[#allocation4 + $0x68] sm:$0xff] %v2007
        %2024 = vst [vmem:[#allocation4 + $0x70] sm:$0xff] %v2008
        %2025 = vst [vmem:[#allocation4 + $0x78] sm:$0xff] %v2009
        %v2026 = vld [vmem:[#allocation3] sm:$0xff]
        %v2027 = vld [vmem:[#allocation3 + $0x8] sm:$0xff]
        %v2028 = vld [vmem:[#allocation3 + $0x10] sm:$0xff]
        %v2029 = vld [vmem:[#allocation3 + $0x18] sm:$0xff]
        %v2030 = vld [vmem:[#allocation3 + $0x20] sm:$0xff]
        %v2031 = vld [vmem:[#allocation3 + $0x28] sm:$0xff]
        %v2032 = vld [vmem:[#allocation3 + $0x30] sm:$0xff]
        %v2033 = vld [vmem:[#allocation3 + $0x38] sm:$0xff]
        %v2034 = vld [vmem:[#allocation3 + $0x40] sm:$0xff]
        %v2035 = vld [vmem:[#allocation3 + $0x48] sm:$0xff]
        %v2036 = vld [vmem:[#allocation3 + $0x50] sm:$0xff]
        %v2037 = vld [vmem:[#allocation3 + $0x58] sm:$0xff]
        %v2038 = vld [vmem:[#allocation3 + $0x60] sm:$0xff]
        %v2039 = vld [vmem:[#allocation3 + $0x68] sm:$0xff]
        %v2040 = vld [vmem:[#allocation3 + $0x70] sm:$0xff]
        %v2041 = vld [vmem:[#allocation3 + $0x78] sm:$0xff]
        %2043 = vset.pattern.permute.xlu0 0
        %2044 = vperm.xlu0 %2043, %v1606
        %v2045 = vpop.permute.xlu0 %2044
        %2048 = vset.pattern.permute.xlu0 0
        %2049 = vperm.xlu0 %2048, %v1607
        %v2050 = vpop.permute.xlu0 %2049
        %2053 = vset.pattern.permute.xlu0 0
        %2054 = vperm.xlu0 %2053, %v1608
        %v2055 = vpop.permute.xlu0 %2054
        %2058 = vset.pattern.permute.xlu0 0
        %2059 = vperm.xlu0 %2058, %v1609
        %v2060 = vpop.permute.xlu0 %2059
        %2063 = vset.pattern.permute.xlu0 0
        %2064 = vperm.xlu0 %2063, %v1610
        %v2065 = vpop.permute.xlu0 %2064
        %2068 = vset.pattern.permute.xlu0 0
        %2069 = vperm.xlu0 %2068, %v1611
        %v2070 = vpop.permute.xlu0 %2069
        %2073 = vset.pattern.permute.xlu0 0
        %2074 = vperm.xlu0 %2073, %v1612
        %v2075 = vpop.permute.xlu0 %2074
        %2078 = vset.pattern.permute.xlu0 0
        %2079 = vperm.xlu0 %2078, %v1613
        %v2080 = vpop.permute.xlu0 %2079
        %2083 = vset.pattern.permute.xlu0 0
        %2084 = vperm.xlu0 %2083, %v1614
        %v2085 = vpop.permute.xlu0 %2084
        %2088 = vset.pattern.permute.xlu0 0
        %2089 = vperm.xlu0 %2088, %v1615
        %v2090 = vpop.permute.xlu0 %2089
        %2093 = vset.pattern.permute.xlu0 0
        %2094 = vperm.xlu0 %2093, %v1616
        %v2095 = vpop.permute.xlu0 %2094
        %2098 = vset.pattern.permute.xlu0 0
        %2099 = vperm.xlu0 %2098, %v1617
        %v2100 = vpop.permute.xlu0 %2099
        %2103 = vset.pattern.permute.xlu0 0
        %2104 = vperm.xlu0 %2103, %v1618
        %v2105 = vpop.permute.xlu0 %2104
        %2108 = vset.pattern.permute.xlu0 0
        %2109 = vperm.xlu0 %2108, %v1619
        %v2110 = vpop.permute.xlu0 %2109
        %2113 = vset.pattern.permute.xlu0 0
        %2114 = vperm.xlu0 %2113, %v1620
        %v2115 = vpop.permute.xlu0 %2114
        %2118 = vset.pattern.permute.xlu0 0
        %2119 = vperm.xlu0 %2118, %v1621
        %v2120 = vpop.permute.xlu0 %2119
        %v2122 = vsel %vm853, %v2045, 0.0
        %v2123 = vsel %vm853, %v2050, 0.0
        %v2124 = vsel %vm853, %v2055, 0.0
        %v2125 = vsel %vm853, %v2060, 0.0
        %v2126 = vsel %vm853, %v2065, 0.0
        %v2127 = vsel %vm853, %v2070, 0.0
        %v2128 = vsel %vm853, %v2075, 0.0
        %v2129 = vsel %vm853, %v2080, 0.0
        %v2130 = vsel %vm853, %v2085, 0.0
        %v2131 = vsel %vm853, %v2090, 0.0
        %v2132 = vsel %vm853, %v2095, 0.0
        %v2133 = vsel %vm853, %v2100, 0.0
        %v2134 = vsel %vm853, %v2105, 0.0
        %v2135 = vsel %vm853, %v2110, 0.0
        %v2136 = vsel %vm853, %v2115, 0.0
        %v2137 = vsel %vm853, %v2120, 0.0
        %v2138 = vadd.f32 %v998, %v2122
        %v2139 = vadd.f32 %v999, %v2123
        %v2140 = vadd.f32 %v1000, %v2124
        %v2141 = vadd.f32 %v1001, %v2125
        %v2142 = vadd.f32 %v1002, %v2126
        %v2143 = vadd.f32 %v1003, %v2127
        %v2144 = vadd.f32 %v1004, %v2128
        %v2145 = vadd.f32 %v1005, %v2129
        %v2146 = vadd.f32 %v1006, %v2130
        %v2147 = vadd.f32 %v1007, %v2131
        %v2148 = vadd.f32 %v1008, %v2132
        %v2149 = vadd.f32 %v1009, %v2133
        %v2150 = vadd.f32 %v1010, %v2134
        %v2151 = vadd.f32 %v1011, %v2135
        %v2152 = vadd.f32 %v1012, %v2136
        %v2153 = vadd.f32 %v1013, %v2137
        %v2154 = vsel %vm1658, 1, 0
        %v2155 = vsel %vm1659, 1, 0
        %v2156 = vsel %vm1660, 1, 0
        %v2157 = vsel %vm1661, 1, 0
        %v2158 = vsel %vm1662, 1, 0
        %v2159 = vsel %vm1663, 1, 0
        %v2160 = vsel %vm1664, 1, 0
        %v2161 = vsel %vm1665, 1, 0
        %v2162 = vsel %vm1666, 1, 0
        %v2163 = vsel %vm1667, 1, 0
        %v2164 = vsel %vm1668, 1, 0
        %v2165 = vsel %vm1669, 1, 0
        %v2166 = vsel %vm1670, 1, 0
        %v2167 = vsel %vm1671, 1, 0
        %v2168 = vsel %vm1672, 1, 0
        %v2169 = vsel %vm1673, 1, 0
        %vm2170 = vcmp.eq.s32.totalorder %v2154, 1
        %vm2171 = vcmp.eq.s32.totalorder %v2155, 1
        %vm2172 = vcmp.eq.s32.totalorder %v2156, 1
        %vm2173 = vcmp.eq.s32.totalorder %v2157, 1
        %vm2174 = vcmp.eq.s32.totalorder %v2158, 1
        %vm2175 = vcmp.eq.s32.totalorder %v2159, 1
        %vm2176 = vcmp.eq.s32.totalorder %v2160, 1
        %vm2177 = vcmp.eq.s32.totalorder %v2161, 1
        %vm2178 = vcmp.eq.s32.totalorder %v2162, 1
        %vm2179 = vcmp.eq.s32.totalorder %v2163, 1
        %vm2180 = vcmp.eq.s32.totalorder %v2164, 1
        %vm2181 = vcmp.eq.s32.totalorder %v2165, 1
        %vm2182 = vcmp.eq.s32.totalorder %v2166, 1
        %vm2183 = vcmp.eq.s32.totalorder %v2167, 1
        %vm2184 = vcmp.eq.s32.totalorder %v2168, 1
        %vm2185 = vcmp.eq.s32.totalorder %v2169, 1
        %v2186 = vsel %vm2170, %v2138, 0.0
        %v2187 = vsel %vm2171, %v2139, 0.0
        %v2188 = vsel %vm2172, %v2140, 0.0
        %v2189 = vsel %vm2173, %v2141, 0.0
        %v2190 = vsel %vm2174, %v2142, 0.0
        %v2191 = vsel %vm2175, %v2143, 0.0
        %v2192 = vsel %vm2176, %v2144, 0.0
        %v2193 = vsel %vm2177, %v2145, 0.0
        %v2194 = vsel %vm2178, %v2146, 0.0
        %v2195 = vsel %vm2179, %v2147, 0.0
        %v2196 = vsel %vm2180, %v2148, 0.0
        %v2197 = vsel %vm2181, %v2149, 0.0
        %v2198 = vsel %vm2182, %v2150, 0.0
        %v2199 = vsel %vm2183, %v2151, 0.0
        %v2200 = vsel %vm2184, %v2152, 0.0
        %v2201 = vsel %vm2185, %v2153, 0.0
        %v2202 = vadd.f32 %v2026, %v2186
        %v2203 = vadd.f32 %v2027, %v2187
        %v2204 = vadd.f32 %v2028, %v2188
        %v2205 = vadd.f32 %v2029, %v2189
        %v2206 = vadd.f32 %v2030, %v2190
        %v2207 = vadd.f32 %v2031, %v2191
        %v2208 = vadd.f32 %v2032, %v2192
        %v2209 = vadd.f32 %v2033, %v2193
        %v2210 = vadd.f32 %v2034, %v2194
        %v2211 = vadd.f32 %v2035, %v2195
        %v2212 = vadd.f32 %v2036, %v2196
        %v2213 = vadd.f32 %v2037, %v2197
        %v2214 = vadd.f32 %v2038, %v2198
        %v2215 = vadd.f32 %v2039, %v2199
        %v2216 = vadd.f32 %v2040, %v2200
        %v2217 = vadd.f32 %v2041, %v2201
        %2218 = vst [vmem:[#allocation3] sm:$0xff] %v2202
        %2219 = vst [vmem:[#allocation3 + $0x8] sm:$0xff] %v2203
        %2220 = vst [vmem:[#allocation3 + $0x10] sm:$0xff] %v2204
        %2221 = vst [vmem:[#allocation3 + $0x18] sm:$0xff] %v2205
        %2222 = vst [vmem:[#allocation3 + $0x20] sm:$0xff] %v2206
        %2223 = vst [vmem:[#allocation3 + $0x28] sm:$0xff] %v2207
        %2224 = vst [vmem:[#allocation3 + $0x30] sm:$0xff] %v2208
        %2225 = vst [vmem:[#allocation3 + $0x38] sm:$0xff] %v2209
        %2226 = vst [vmem:[#allocation3 + $0x40] sm:$0xff] %v2210
        %2227 = vst [vmem:[#allocation3 + $0x48] sm:$0xff] %v2211
        %2228 = vst [vmem:[#allocation3 + $0x50] sm:$0xff] %v2212
        %2229 = vst [vmem:[#allocation3 + $0x58] sm:$0xff] %v2213
        %2230 = vst [vmem:[#allocation3 + $0x60] sm:$0xff] %v2214
        %2231 = vst [vmem:[#allocation3 + $0x68] sm:$0xff] %v2215
        %2232 = vst [vmem:[#allocation3 + $0x70] sm:$0xff] %v2216
        %2233 = vst [vmem:[#allocation3 + $0x78] sm:$0xff] %v2217
        // Predicated region
        $region41: #{tpu_custom_call.1} parent=27 // pred_check
          %p2234 = pneg %p220
        $region42: #{tpu_custom_call.1} parent=27 // pred_check_branch
          %2236 = sbr.rel (%p2234) target = $region44
        $region43: #{tpu_custom_call.1} parent=27 // pred_region
          %v2237 = vld [vmem:[#allocation2] sm:$0xff]
          %v2238 = vld [vmem:[#allocation2 + $0x8] sm:$0xff]
          %v2239 = vld [vmem:[#allocation2 + $0x10] sm:$0xff]
          %v2240 = vld [vmem:[#allocation2 + $0x18] sm:$0xff]
          %v2241 = vld [vmem:[#allocation2 + $0x20] sm:$0xff]
          %v2242 = vld [vmem:[#allocation2 + $0x28] sm:$0xff]
          %v2243 = vld [vmem:[#allocation2 + $0x30] sm:$0xff]
          %v2244 = vld [vmem:[#allocation2 + $0x38] sm:$0xff]
          %v2245 = vld [vmem:[#allocation2 + $0x40] sm:$0xff]
          %v2246 = vld [vmem:[#allocation2 + $0x48] sm:$0xff]
          %v2247 = vld [vmem:[#allocation2 + $0x50] sm:$0xff]
          %v2248 = vld [vmem:[#allocation2 + $0x58] sm:$0xff]
          %v2249 = vld [vmem:[#allocation2 + $0x60] sm:$0xff]
          %v2250 = vld [vmem:[#allocation2 + $0x68] sm:$0xff]
          %v2251 = vld [vmem:[#allocation2 + $0x70] sm:$0xff]
          %v2252 = vld [vmem:[#allocation2 + $0x78] sm:$0xff]
          %v2253 = vadd.f32 %v2237, %v2238
          %v2254 = vadd.f32 %v2253, %v2239
          %v2255 = vadd.f32 %v2254, %v2240
          %v2256 = vadd.f32 %v2255, %v2241
          %v2257 = vadd.f32 %v2256, %v2242
          %v2258 = vadd.f32 %v2257, %v2243
          %v2259 = vadd.f32 %v2258, %v2244
          %v2260 = vadd.f32 %v2259, %v2245
          %v2261 = vadd.f32 %v2260, %v2246
          %v2262 = vadd.f32 %v2261, %v2247
          %v2263 = vadd.f32 %v2262, %v2248
          %v2264 = vadd.f32 %v2263, %v2249
          %v2265 = vadd.f32 %v2264, %v2250
          %v2266 = vadd.f32 %v2265, %v2251
          %v2267 = vadd.f32 %v2266, %v2252
          %2268 = vadd.xlane.f32.xlu0 %v2267
          %v2269 = vpop.xlane.xlu0 %2268
          %v2270 = vrot.slane %v2269, 4
          %v2271 = vadd.f32 %v2269, %v2270
          %v2272 = vrot.slane %v2271, 2
          %v2273 = vadd.f32 %v2271, %v2272
          %v2274 = vrot.slane %v2273, 1
          %v2275 = vadd.f32 %v2273, %v2274
          %s2276 = vtos %v2275
          %v2277 = vld [vmem:[#allocation3] sm:$0xff]
          %v2278 = vld [vmem:[#allocation3 + $0x8] sm:$0xff]
          %v2279 = vld [vmem:[#allocation3 + $0x10] sm:$0xff]
          %v2280 = vld [vmem:[#allocation3 + $0x18] sm:$0xff]
          %v2281 = vld [vmem:[#allocation3 + $0x20] sm:$0xff]
          %v2282 = vld [vmem:[#allocation3 + $0x28] sm:$0xff]
          %v2283 = vld [vmem:[#allocation3 + $0x30] sm:$0xff]
          %v2284 = vld [vmem:[#allocation3 + $0x38] sm:$0xff]
          %v2285 = vld [vmem:[#allocation3 + $0x40] sm:$0xff]
          %v2286 = vld [vmem:[#allocation3 + $0x48] sm:$0xff]
          %v2287 = vld [vmem:[#allocation3 + $0x50] sm:$0xff]
          %v2288 = vld [vmem:[#allocation3 + $0x58] sm:$0xff]
          %v2289 = vld [vmem:[#allocation3 + $0x60] sm:$0xff]
          %v2290 = vld [vmem:[#allocation3 + $0x68] sm:$0xff]
          %v2291 = vld [vmem:[#allocation3 + $0x70] sm:$0xff]
          %v2292 = vld [vmem:[#allocation3 + $0x78] sm:$0xff]
          %v2293 = vadd.f32 %v2277, %v2278
          %v2294 = vadd.f32 %v2293, %v2279
          %v2295 = vadd.f32 %v2294, %v2280
          %v2296 = vadd.f32 %v2295, %v2281
          %v2297 = vadd.f32 %v2296, %v2282
          %v2298 = vadd.f32 %v2297, %v2283
          %v2299 = vadd.f32 %v2298, %v2284
          %v2300 = vadd.f32 %v2299, %v2285
          %v2301 = vadd.f32 %v2300, %v2286
          %v2302 = vadd.f32 %v2301, %v2287
          %v2303 = vadd.f32 %v2302, %v2288
          %v2304 = vadd.f32 %v2303, %v2289
          %v2305 = vadd.f32 %v2304, %v2290
          %v2306 = vadd.f32 %v2305, %v2291
          %v2307 = vadd.f32 %v2306, %v2292
          %2308 = vadd.xlane.f32.xlu0 %v2307
          %v2309 = vpop.xlane.xlu0 %2308
          %v2310 = vrot.slane %v2309, 4
          %v2311 = vadd.f32 %v2309, %v2310
          %v2312 = vrot.slane %v2311, 2
          %v2313 = vadd.f32 %v2311, %v2312
          %v2314 = vrot.slane %v2313, 1
          %v2315 = vadd.f32 %v2313, %v2314
          %s2316 = vtos %v2315
          %v2317 = vld [vmem:[#allocation4] sm:$0xff]
          %v2318 = vld [vmem:[#allocation4 + $0x8] sm:$0xff]
          %v2319 = vld [vmem:[#allocation4 + $0x10] sm:$0xff]
          %v2320 = vld [vmem:[#allocation4 + $0x18] sm:$0xff]
          %v2321 = vld [vmem:[#allocation4 + $0x20] sm:$0xff]
          %v2322 = vld [vmem:[#allocation4 + $0x28] sm:$0xff]
          %v2323 = vld [vmem:[#allocation4 + $0x30] sm:$0xff]
          %v2324 = vld [vmem:[#allocation4 + $0x38] sm:$0xff]
          %v2325 = vld [vmem:[#allocation4 + $0x40] sm:$0xff]
          %v2326 = vld [vmem:[#allocation4 + $0x48] sm:$0xff]
          %v2327 = vld [vmem:[#allocation4 + $0x50] sm:$0xff]
          %v2328 = vld [vmem:[#allocation4 + $0x58] sm:$0xff]
          %v2329 = vld [vmem:[#allocation4 + $0x60] sm:$0xff]
          %v2330 = vld [vmem:[#allocation4 + $0x68] sm:$0xff]
          %v2331 = vld [vmem:[#allocation4 + $0x70] sm:$0xff]
          %v2332 = vld [vmem:[#allocation4 + $0x78] sm:$0xff]
          %v2333 = vadd.f32 %v2317, %v2318
          %v2334 = vadd.f32 %v2333, %v2319
          %v2335 = vadd.f32 %v2334, %v2320
          %v2336 = vadd.f32 %v2335, %v2321
          %v2337 = vadd.f32 %v2336, %v2322
          %v2338 = vadd.f32 %v2337, %v2323
          %v2339 = vadd.f32 %v2338, %v2324
          %v2340 = vadd.f32 %v2339, %v2325
          %v2341 = vadd.f32 %v2340, %v2326
          %v2342 = vadd.f32 %v2341, %v2327
          %v2343 = vadd.f32 %v2342, %v2328
          %v2344 = vadd.f32 %v2343, %v2329
          %v2345 = vadd.f32 %v2344, %v2330
          %v2346 = vadd.f32 %v2345, %v2331
          %v2347 = vadd.f32 %v2346, %v2332
          %2348 = vadd.xlane.f32.xlu0 %v2347
          %v2349 = vpop.xlane.xlu0 %2348
          %v2350 = vrot.slane %v2349, 4
          %v2351 = vadd.f32 %v2349, %v2350
          %v2352 = vrot.slane %v2351, 2
          %v2353 = vadd.f32 %v2351, %v2352
          %v2354 = vrot.slane %v2353, 1
          %v2355 = vadd.f32 %v2353, %v2354
          %s2356 = vtos %v2355
          %vm2357 = vcmp.eq.s32.totalorder %v1625, 0
          %vm2358 = vcmp.eq.s32.totalorder %v1625, 1
          %vm2359 = vcmp.eq.s32.totalorder %v1625, 2
          %v2360 = vstv %s2356
          %v2361 = vsel %vm2359, %v2360, 0.0
          %v2362 = vstv %s2316
          %v2363 = vsel %vm2358, %v2362, %v2361
          %v2364 = vstv %s2276
          %v2365 = vsel %vm2357, %v2364, %v2363
          %2366 = vst [vmem:[%s217] sm:$0xff] %v2365
        $region44: #{tpu_custom_call.1} parent=27 // pred_fallthru
          _
        %s2367 = sand.u32 %s89, 1
        %s2368 = scalar_lea.sflag [#allocation7], %s2367
        %s2369 = sand.u32 %s89, 1
        %s2370 = smul.addr %s2369, 8
        %s2371 = scalar_lea.vmem [#allocation10], %s2370
        // Predicated region
        $region45: #{tpu_custom_call.1} parent=27 // pred_check
          %p2372 = pneg %p99
        $region46: #{tpu_custom_call.1} parent=27 // pred_check_branch
          %2374 = sbr.rel (%p2372) target = $region48
        $region47: #{tpu_custom_call.1} parent=27 // pred_region
          %s2376 = ssub.s32 128, 128
          %2377 = vsyncadd %s2368, %s2376
          %s2378 = smul.addr %s24, 128
          %s2379 = scalar_lea.hbm %s2, %s2378
          %s2381 = sshll.u32 %s2371, 4
          %s2382 = int_to_ptr.vmem [resolvable:$true] %s2381
          %2384 = dma.vmem_to_hbm [thread:$0]  %s2382, 128, %s2379, %s2368
        $region48: #{tpu_custom_call.1} parent=27 // pred_fallthru
          _
      $region28: #{tpu_custom_call.1} parent=5 // pred_fallthru
        _
      %p2385 = scmp.le.s32.totalorder 2, %s15
      // Predicated region
      $region49: #{tpu_custom_call.1} parent=5 // pred_check
        %p2386 = pneg %p2385
      $region50: #{tpu_custom_call.1} parent=5 // pred_check_branch
        %2388 = sbr.rel (%p2386) target = $region52
      $region51: #{tpu_custom_call.1} parent=5 // pred_region
        %s2389 = ssub.s32 %s15, 2
        // Predicated region
        $region53: #{tpu_custom_call.1} parent=51 // pred_check
          %p2390 = pneg %p105
        $region54: #{tpu_custom_call.1} parent=51 // pred_check_branch
          %2392 = sbr.rel (%p2390) target = $region56
        $region55: #{tpu_custom_call.1} parent=51 // pred_region
          %s2393 = sand.u32 %s90, 1
          %s2394 = scalar_lea.sflag [#allocation7], %s2393
          %s2395 = sand.u32 %s90, 1
          %s2396 = smul.addr %s2395, 8
          %s2397 = scalar_lea.vmem [#allocation10], %s2396
          %2398 = dma.done %s2394, 128
        $region56: #{tpu_custom_call.1} parent=51 // pred_fallthru
          _
      $region52: #{tpu_custom_call.1} parent=5 // pred_fallthru
        _
    $region6: #{tpu_custom_call.1} parent=1 // loop_footer
      %s19 = sadd.s32 1, %s15
    $region7: #{tpu_custom_call.1} parent=1 // loop_footer_branch
      %14 = sbr.rel target = $region3
    $region8: #{tpu_custom_call.1} parent=1 // loop_exit
      _
    %2399 = vsyncpa [#allocation6], 1
    %s2400 = scalar_lea.sflag [#allocation6], 1
    %2401 = vsyncpa %s2400, 1
    %2402 = vsyncpa [#allocation9], 1
    %2403 = vsyncpa [#allocation7], 1
    %s2404 = scalar_lea.sflag [#allocation7], 1
    %2405 = vsyncpa %s2404, 1

</llo_original>
